<compile_context>
chip_gen: v7x
topology: tpu7x:2x2x1
jax: 0.10.0
libtpu: 0.0.40
codegen_flags: <defaults>
</compile_context>

<pallas_src>
import math

import jax
import jax.numpy as jnp
from jax.experimental import pallas as pl
from jax.experimental.pallas import tpu as pltpu

# --- small, forward-consistent shapes ---------------------------------------
B = 2          # batch (per view)
S = 8          # sequence length
D_IN = 4       # raw (masked) input feature width
D_MODEL = 32   # transformer_model.config['d_model']
N_HEADS = 2
HEAD_DIM = D_MODEL // N_HEADS
D_FF_T = 64    # transformer feed-forward width
DIM_FF = 64    # projector hidden width (dim_ff)
DIM_OUT = 16   # projector output width (dim_out)
LN_EPS = 1e-5

NB = 2 * B     # both views fused along the row axis
M = NB * S     # total token rows processed per call
LANES = 128    # lane padding of the packed parameter tensors

# --- packed weight slab layout (bf16, (W_ROWS, 128), 16-aligned row offsets) --
R_W_IN = 0     # (D_IN,    D_MODEL)
R_POS = 16     # (S,       D_MODEL)
R_W_QKV = 32   # (D_MODEL, 3*D_MODEL)  fused [Wq | Wk | Wv], head-contiguous cols
R_W_O = 64     # (D_MODEL, D_MODEL)
R_W_FF1 = 96   # (D_MODEL, D_FF_T)
R_W_FF2 = 128  # (D_FF_T,  D_MODEL)
R_W_P1 = 192   # (D_MODEL, DIM_FF)
R_W_P2 = 224   # (DIM_FF,  DIM_OUT)
W_ROWS = 288

# --- packed bias / LN-parameter table layout (f32, (16, 128)) -----------------
(ROW_B_IN, ROW_B_QKV, ROW_B_O, ROW_LN1_G, ROW_LN1_B, ROW_B_FF1, ROW_B_FF2,
 ROW_LN2_G, ROW_LN2_B, ROW_B_P1, ROW_B_P2) = range(11)
VEC_ROWS = 16


def _layer_norm(x, g, b):
    mu = jnp.mean(x, axis=-1, keepdims=True)
    var = jnp.mean((x - mu) ** 2, axis=-1, keepdims=True)
    return (x - mu) * jax.lax.rsqrt(var + LN_EPS) * g + b


def _contrastive_kernel(
    x1_ref,    # (B*S, D_IN)     masked view 1 tokens
    x2_ref,    # (B*S, D_IN)     masked view 2 tokens
    w_ref,     # (W_ROWS, 128)   bf16 packed weight slab
    vec_ref,   # (VEC_ROWS, 128) f32 packed biases / LN params
    z1_ref,    # (B, DIM_OUT)
    z2_ref,    # (B, DIM_OUT)
):
    bf16 = jnp.bfloat16
    f32 = jnp.float32

    # Both views stacked along the row (token) axis inside the kernel.
    x = jnp.concatenate([x1_ref[...], x2_ref[...]], axis=0)            # (M, D_IN)

    # --- transformer: input projection + positional embedding ----------------
    w_in = w_ref[R_W_IN:R_W_IN + D_IN, 0:D_MODEL]                      # bf16
    h = jnp.dot(x.astype(bf16), w_in, preferred_element_type=f32)
    h = h + vec_ref[ROW_B_IN:ROW_B_IN + 1, 0:D_MODEL]
    pos = w_ref[R_POS:R_POS + S, 0:D_MODEL].astype(f32)                # (S, D_MODEL)
    h = (h.reshape(NB, S, D_MODEL) + pos[None, :, :]).reshape(M, D_MODEL)

    # --- fused QKV projection: one (M,32)@(32,96) MXU push --------------------
    w_qkv = w_ref[R_W_QKV:R_W_QKV + D_MODEL, 0:3 * D_MODEL]
    qkv = jnp.dot(h.astype(bf16), w_qkv, preferred_element_type=f32)
    qkv = qkv + vec_ref[ROW_B_QKV:ROW_B_QKV + 1, 0:3 * D_MODEL]
    q = qkv[:, 0:D_MODEL].reshape(NB, S, D_MODEL).astype(bf16)
    k = qkv[:, D_MODEL:2 * D_MODEL].reshape(NB, S, D_MODEL).astype(bf16)
    v = qkv[:, 2 * D_MODEL:3 * D_MODEL].reshape(NB, S, D_MODEL).astype(bf16)

    # --- multi-head self attention, softmax fused across heads ----------------
    # 1/sqrt(HEAD_DIM) is pre-folded into Wq at packing time.
    sc = jnp.concatenate(
        [jnp.einsum('bqd,bkd->bqk',
                    q[:, :, hh * HEAD_DIM:(hh + 1) * HEAD_DIM],
                    k[:, :, hh * HEAD_DIM:(hh + 1) * HEAD_DIM],
                    preferred_element_type=f32)
         for hh in range(N_HEADS)], axis=0)                            # (H*NB, S, S)
    sc = sc - jnp.max(sc, axis=-1, keepdims=True)
    p = jnp.exp(sc)
    # EUP approx reciprocal: ~1e-3 rel. error vs an exact softmax denominator.
    p = p * pl.reciprocal(jnp.sum(p, axis=-1, keepdims=True), approx=True)
    p = p.astype(bf16)
    o = jnp.concatenate(
        [jnp.einsum('bqk,bkd->bqd',
                    p[hh * NB:(hh + 1) * NB],
                    v[:, :, hh * HEAD_DIM:(hh + 1) * HEAD_DIM],
                    preferred_element_type=f32)
         for hh in range(N_HEADS)], axis=-1).reshape(M, D_MODEL)

    w_o = w_ref[R_W_O:R_W_O + D_MODEL, 0:D_MODEL]
    attn = jnp.dot(o.astype(bf16), w_o, preferred_element_type=f32)
    attn = attn + vec_ref[ROW_B_O:ROW_B_O + 1, 0:D_MODEL]

    # --- residual + LN, feed-forward, residual + LN (post-LN layer) -----------
    h1 = _layer_norm(h + attn,
                     vec_ref[ROW_LN1_G:ROW_LN1_G + 1, 0:D_MODEL],
                     vec_ref[ROW_LN1_B:ROW_LN1_B + 1, 0:D_MODEL])
    w_ff1 = w_ref[R_W_FF1:R_W_FF1 + D_MODEL, 0:D_FF_T]
    ff = jnp.dot(h1.astype(bf16), w_ff1, preferred_element_type=f32)
    ff = jnp.maximum(ff + vec_ref[ROW_B_FF1:ROW_B_FF1 + 1, 0:D_FF_T], 0.0)
    w_ff2 = w_ref[R_W_FF2:R_W_FF2 + D_FF_T, 0:D_MODEL]
    ff = jnp.dot(ff.astype(bf16), w_ff2, preferred_element_type=f32)
    ff = ff + vec_ref[ROW_B_FF2:ROW_B_FF2 + 1, 0:D_MODEL]
    h2 = _layer_norm(h1 + ff,
                     vec_ref[ROW_LN2_G:ROW_LN2_G + 1, 0:D_MODEL],
                     vec_ref[ROW_LN2_B:ROW_LN2_B + 1, 0:D_MODEL])      # (M, D_MODEL)

    # --- emb = transformer(x).mean(dim=1), per sequence ------------------------
    emb = jnp.mean(h2.reshape(NB, S, D_MODEL), axis=1)                 # (NB, D_MODEL)

    # --- shared projector: Linear -> ReLU -> Linear (both views at once) -------
    w_p1 = w_ref[R_W_P1:R_W_P1 + D_MODEL, 0:DIM_FF]
    zz = jnp.dot(emb.astype(bf16), w_p1, preferred_element_type=f32)
    zz = jnp.maximum(zz + vec_ref[ROW_B_P1:ROW_B_P1 + 1, 0:DIM_FF], 0.0)
    w_p2 = w_ref[R_W_P2:R_W_P2 + DIM_FF, 0:DIM_OUT]
    zz = jnp.dot(zz.astype(bf16), w_p2, preferred_element_type=f32)
    zz = zz + vec_ref[ROW_B_P2:ROW_B_P2 + 1, 0:DIM_OUT]                # (NB, DIM_OUT)

    z1_ref[...] = zz[:B, :]
    z2_ref[...] = zz[B:, :]


# --- advisory cost estimate so XLA can schedule around this tiny call ---------
_MM_FLOPS = 2 * M * (D_IN * D_MODEL + 3 * D_MODEL * D_MODEL
                     + D_MODEL * D_MODEL + 2 * D_MODEL * D_FF_T)
_ATTN_FLOPS = 2 * (2 * NB * N_HEADS * S * S * HEAD_DIM)
_PROJ_FLOPS = 2 * NB * (D_MODEL * DIM_FF + DIM_FF * DIM_OUT)
_FLOPS = _MM_FLOPS + _ATTN_FLOPS + _PROJ_FLOPS
_TRANS = NB * N_HEADS * S * S + NB * N_HEADS * S + 4 * M       # exp + recip + rsqrt
_BYTES = (2 * B * S * D_IN * 4 + W_ROWS * LANES * 2
          + VEC_ROWS * LANES * 4 + 2 * B * DIM_OUT * 4)


def masked_contrastive_forward(x_masked, x_masked_alt, params):
    """Forward of MaskedContrastiveModel: returns (z1, z2).

    Both views share the transformer + projector weights and are processed in a
    single fused pallas_call (weights DMA'd once, no wrapper-side concat/slice).
    """
    w_slab, vec_tab = params
    x1 = x_masked.reshape(B * S, D_IN)        # reshape only (no extra XLA launch)
    x2 = x_masked_alt.reshape(B * S, D_IN)
    z1, z2 = pl.pallas_call(
        _contrastive_kernel,
        out_shape=(jax.ShapeDtypeStruct((B, DIM_OUT), jnp.float32),
                   jax.ShapeDtypeStruct((B, DIM_OUT), jnp.float32)),
        in_specs=[pl.BlockSpec(memory_space=pltpu.MemorySpace.VMEM)] * 4,
        out_specs=(pl.BlockSpec(memory_space=pltpu.MemorySpace.VMEM),
                   pl.BlockSpec(memory_space=pltpu.MemorySpace.VMEM)),
        cost_estimate=pl.CostEstimate(flops=_FLOPS, transcendentals=_TRANS,
                                      bytes_accessed=_BYTES),
    )(x1, x2, w_slab, vec_tab)
    return z1, z2


def init_params(key):
    keys = jax.random.split(key, 10)

    def w(k, shape, scl=0.05):
        return (scl * jax.random.normal(k, shape)).astype(jnp.float32)

    w_in = w(keys[0], (D_IN, D_MODEL))
    pos = w(keys[1], (S, D_MODEL))
    # Attention scale 1/sqrt(HEAD_DIM) folded into Wq at packing time (and would
    # apply to b_q too; biases are zero here so nothing else to scale).
    w_q = w(keys[2], (D_MODEL, D_MODEL)) * (1.0 / math.sqrt(HEAD_DIM))
    w_k = w(keys[3], (D_MODEL, D_MODEL))
    w_v = w(keys[4], (D_MODEL, D_MODEL))
    w_qkv = jnp.concatenate([w_q, w_k, w_v], axis=1)                   # (32, 96)
    w_o = w(keys[5], (D_MODEL, D_MODEL))
    w_ff1 = w(keys[6], (D_MODEL, D_FF_T))
    w_ff2 = w(keys[7], (D_FF_T, D_MODEL))
    w_p1 = w(keys[8], (D_MODEL, DIM_FF))
    w_p2 = w(keys[9], (DIM_FF, DIM_OUT))

    # Pack all matrices into one lane-padded sublane-stacked slab (bf16).
    slab = jnp.zeros((W_ROWS, LANES), jnp.float32)

    def put(s, row, mat):
        r, c = mat.shape
        return s.at[row:row + r, 0:c].set(mat)

    slab = put(slab, R_W_IN, w_in)
    slab = put(slab, R_POS, pos)
    slab = put(slab, R_W_QKV, w_qkv)
    slab = put(slab, R_W_O, w_o)
    slab = put(slab, R_W_FF1, w_ff1)
    slab = put(slab, R_W_FF2, w_ff2)
    slab = put(slab, R_W_P1, w_p1)
    slab = put(slab, R_W_P2, w_p2)
    slab = slab.astype(jnp.bfloat16)    # bf16 MXU operands; halves weight DMA

    # Packed (16, 128) table: biases zero, LN gammas one (f32 for VPU math).
    vec = jnp.zeros((VEC_ROWS, LANES), jnp.float32)
    vec = vec.at[ROW_LN1_G, 0:D_MODEL].set(1.0)
    vec = vec.at[ROW_LN2_G, 0:D_MODEL].set(1.0)

    return [slab, vec]


if __name__ == "__main__":
    key = jax.random.PRNGKey(0)
    k_x, k_m, k_p = jax.random.split(key, 3)

    x = jax.random.normal(k_x, (B, S, D_IN), jnp.float32)
    # Two independently masked views of the same sequence (masking == zero-out).
    mask1 = (jax.random.uniform(jax.random.fold_in(k_m, 1), (B, S, 1)) > 0.25
             ).astype(jnp.float32)
    mask2 = (jax.random.uniform(jax.random.fold_in(k_m, 2), (B, S, 1)) > 0.25
             ).astype(jnp.float32)
    x_masked = x * mask1
    x_masked_alt = x * mask2

    params = init_params(k_p)

    z1, z2 = masked_contrastive_forward(x_masked, x_masked_alt, params)
    jax.block_until_ready((z1, z2))

    assert z1.shape == (B, DIM_OUT) and z2.shape == (B, DIM_OUT)
    assert z1.dtype == jnp.float32 and z2.dtype == jnp.float32
    assert bool(jnp.all(jnp.isfinite(z1))) and bool(jnp.all(jnp.isfinite(z2)))
    print("KERNEL_OK")
</pallas_src>

<mosaic_0001>
module attributes {stable_mosaic.version = 11 : i64} {
  func.func @_contrastive_kernel(%arg0: memref<16x4xf32, #tpu.memory_space<vmem>>, %arg1: memref<16x4xf32, #tpu.memory_space<vmem>>, %arg2: memref<288x128xbf16, #tpu.memory_space<vmem>>, %arg3: memref<16x128xf32, #tpu.memory_space<vmem>>, %arg4: memref<2x16xf32, #tpu.memory_space<vmem>>, %arg5: memref<2x16xf32, #tpu.memory_space<vmem>>) attributes {dimension_semantics = [], scalar_prefetch = 0 : i64, scratch_operands = 0 : i64, tpu.core_type = #tpu.core_type<tc>} {
    %c0 = arith.constant 0 : index
    %c0_0 = arith.constant 0 : index
    %0 = vector.load %arg0[%c0, %c0_0] : memref<16x4xf32, #tpu.memory_space<vmem>>, vector<16x4xf32>
    %c0_1 = arith.constant 0 : index
    %c0_2 = arith.constant 0 : index
    %1 = vector.load %arg1[%c0_1, %c0_2] : memref<16x4xf32, #tpu.memory_space<vmem>>, vector<16x4xf32>
    %2 = tpu.concatenate %0, %1 in 0 : vector<16x4xf32>, vector<16x4xf32> -> vector<32x4xf32>
    %c0_3 = arith.constant 0 : index
    %c0_4 = arith.constant 0 : index
    %3 = vector.load %arg2[%c0_3, %c0_4] : memref<288x128xbf16, #tpu.memory_space<vmem>>, vector<4x32xbf16>
    %4 = arith.truncf %2 : vector<32x4xf32> to vector<32x4xbf16>
    %cst = arith.constant dense<0.000000e+00> : vector<32x32xf32>
    %5 = tpu.matmul %4, %3, %cst {dimension_numbers = #tpu.dot_dimension_numbers<[1], [0], [0], [1], [0, 0, 1, 1], [], []>} : vector<32x4xbf16>, vector<4x32xbf16>, vector<32x32xf32> -> vector<32x32xf32>
    %c0_5 = arith.constant 0 : index
    %c0_6 = arith.constant 0 : index
    %6 = vector.load %arg3[%c0_5, %c0_6] : memref<16x128xf32, #tpu.memory_space<vmem>>, vector<1x32xf32>
    %7 = vector.broadcast %6 : vector<1x32xf32> to vector<32x32xf32>
    %8 = arith.addf %5, %7 : vector<32x32xf32>
    %c16 = arith.constant 16 : index
    %c0_7 = arith.constant 0 : index
    %9 = vector.load %arg2[%c16, %c0_7] : memref<288x128xbf16, #tpu.memory_space<vmem>>, vector<8x32xbf16>
    %10 = arith.extf %9 : vector<8x32xbf16> to vector<8x32xf32>
    %11 = vector.shape_cast %8 : vector<32x32xf32> to vector<4x8x32xf32>
    %12 = vector.shape_cast %10 : vector<8x32xf32> to vector<1x8x32xf32>
    %13 = vector.broadcast %12 : vector<1x8x32xf32> to vector<4x8x32xf32>
    %14 = arith.addf %11, %13 : vector<4x8x32xf32>
    %15 = vector.shape_cast %14 : vector<4x8x32xf32> to vector<32x32xf32>
    %c32 = arith.constant 32 : index
    %c0_8 = arith.constant 0 : index
    %16 = vector.load %arg2[%c32, %c0_8] : memref<288x128xbf16, #tpu.memory_space<vmem>>, vector<32x96xbf16>
    %17 = arith.truncf %15 : vector<32x32xf32> to vector<32x32xbf16>
    %cst_9 = arith.constant dense<0.000000e+00> : vector<32x96xf32>
    %18 = tpu.matmul %17, %16, %cst_9 {dimension_numbers = #tpu.dot_dimension_numbers<[1], [0], [0], [1], [0, 0, 1, 1], [], []>} : vector<32x32xbf16>, vector<32x96xbf16>, vector<32x96xf32> -> vector<32x96xf32>
    %c1 = arith.constant 1 : index
    %c0_10 = arith.constant 0 : index
    %19 = vector.load %arg3[%c1, %c0_10] : memref<16x128xf32, #tpu.memory_space<vmem>>, vector<1x96xf32>
    %20 = vector.broadcast %19 : vector<1x96xf32> to vector<32x96xf32>
    %21 = arith.addf %18, %20 : vector<32x96xf32>
    %22 = vector.extract_strided_slice %21 {offsets = [0, 0], sizes = [32, 32], strides = [1, 1]} : vector<32x96xf32> to vector<32x32xf32>
    %23 = vector.shape_cast %22 : vector<32x32xf32> to vector<4x8x32xf32>
    %24 = arith.truncf %23 : vector<4x8x32xf32> to vector<4x8x32xbf16>
    %25 = vector.extract_strided_slice %21 {offsets = [0, 32], sizes = [32, 32], strides = [1, 1]} : vector<32x96xf32> to vector<32x32xf32>
    %26 = vector.shape_cast %25 : vector<32x32xf32> to vector<4x8x32xf32>
    %27 = arith.truncf %26 : vector<4x8x32xf32> to vector<4x8x32xbf16>
    %28 = vector.extract_strided_slice %21 {offsets = [0, 64], sizes = [32, 32], strides = [1, 1]} : vector<32x96xf32> to vector<32x32xf32>
    %29 = vector.shape_cast %28 : vector<32x32xf32> to vector<4x8x32xf32>
    %30 = arith.truncf %29 : vector<4x8x32xf32> to vector<4x8x32xbf16>
    %31 = vector.extract_strided_slice %24 {offsets = [0, 0, 0], sizes = [4, 8, 16], strides = [1, 1, 1]} : vector<4x8x32xbf16> to vector<4x8x16xbf16>
    %32 = vector.extract_strided_slice %27 {offsets = [0, 0, 0], sizes = [4, 8, 16], strides = [1, 1, 1]} : vector<4x8x32xbf16> to vector<4x8x16xbf16>
    "tpu.trace_start"() <{level = 10 : i32, message = "bqd,bkd->bqk"}> : () -> ()
    %cst_11 = arith.constant dense<0.000000e+00> : vector<4x8x8xf32>
    %33 = tpu.matmul %31, %32, %cst_11 {dimension_numbers = #tpu.dot_dimension_numbers<[2], [2], [1], [1], [0, 0, 0, 1, 1, 1], [0], [0]>} : vector<4x8x16xbf16>, vector<4x8x16xbf16>, vector<4x8x8xf32> -> vector<4x8x8xf32>
    "tpu.trace_stop"() : () -> ()
    %34 = vector.extract_strided_slice %24 {offsets = [0, 0, 16], sizes = [4, 8, 16], strides = [1, 1, 1]} : vector<4x8x32xbf16> to vector<4x8x16xbf16>
    %35 = vector.extract_strided_slice %27 {offsets = [0, 0, 16], sizes = [4, 8, 16], strides = [1, 1, 1]} : vector<4x8x32xbf16> to vector<4x8x16xbf16>
    "tpu.trace_start"() <{level = 10 : i32, message = "bqd,bkd->bqk"}> : () -> ()
    %cst_12 = arith.constant dense<0.000000e+00> : vector<4x8x8xf32>
    %36 = tpu.matmul %34, %35, %cst_12 {dimension_numbers = #tpu.dot_dimension_numbers<[2], [2], [1], [1], [0, 0, 0, 1, 1, 1], [0], [0]>} : vector<4x8x16xbf16>, vector<4x8x16xbf16>, vector<4x8x8xf32> -> vector<4x8x8xf32>
    "tpu.trace_stop"() : () -> ()
    %37 = tpu.concatenate %33, %36 in 0 : vector<4x8x8xf32>, vector<4x8x8xf32> -> vector<8x8x8xf32>
    %cst_13 = arith.constant dense<0xFF800000> : vector<8x8xf32>
    %38 = vector.multi_reduction <maximumf>, %37, %cst_13 [2] : vector<8x8x8xf32> to vector<8x8xf32>
    %39 = vector.shape_cast %38 : vector<8x8xf32> to vector<8x8x1xf32>
    %40 = vector.broadcast %39 : vector<8x8x1xf32> to vector<8x8x8xf32>
    %41 = arith.subf %37, %40 : vector<8x8x8xf32>
    %42 = math.exp %41 : vector<8x8x8xf32>
    %cst_14 = arith.constant dense<0.000000e+00> : vector<8x8xf32>
    %43 = vector.multi_reduction <add>, %42, %cst_14 [2] : vector<8x8x8xf32> to vector<8x8xf32>
    %44 = vector.shape_cast %43 : vector<8x8xf32> to vector<8x8x1xf32>
    %45 = tpu.reciprocal %44 {approx = true} : vector<8x8x1xf32> -> vector<8x8x1xf32>
    %46 = vector.broadcast %45 : vector<8x8x1xf32> to vector<8x8x8xf32>
    %47 = arith.mulf %42, %46 : vector<8x8x8xf32>
    %48 = arith.truncf %47 : vector<8x8x8xf32> to vector<8x8x8xbf16>
    %49 = vector.extract_strided_slice %48 {offsets = [0, 0, 0], sizes = [4, 8, 8], strides = [1, 1, 1]} : vector<8x8x8xbf16> to vector<4x8x8xbf16>
    %50 = vector.extract_strided_slice %30 {offsets = [0, 0, 0], sizes = [4, 8, 16], strides = [1, 1, 1]} : vector<4x8x32xbf16> to vector<4x8x16xbf16>
    "tpu.trace_start"() <{level = 10 : i32, message = "bqk,bkd->bqd"}> : () -> ()
    %cst_15 = arith.constant dense<0.000000e+00> : vector<4x8x16xf32>
    %51 = tpu.matmul %49, %50, %cst_15 {dimension_numbers = #tpu.dot_dimension_numbers<[2], [1], [1], [2], [0, 0, 0, 1, 1, 2], [0], [0]>} : vector<4x8x8xbf16>, vector<4x8x16xbf16>, vector<4x8x16xf32> -> vector<4x8x16xf32>
    "tpu.trace_stop"() : () -> ()
    %52 = vector.extract_strided_slice %48 {offsets = [4, 0, 0], sizes = [4, 8, 8], strides = [1, 1, 1]} : vector<8x8x8xbf16> to vector<4x8x8xbf16>
    %53 = vector.extract_strided_slice %30 {offsets = [0, 0, 16], sizes = [4, 8, 16], strides = [1, 1, 1]} : vector<4x8x32xbf16> to vector<4x8x16xbf16>
    "tpu.trace_start"() <{level = 10 : i32, message = "bqk,bkd->bqd"}> : () -> ()
    %cst_16 = arith.constant dense<0.000000e+00> : vector<4x8x16xf32>
    %54 = tpu.matmul %52, %53, %cst_16 {dimension_numbers = #tpu.dot_dimension_numbers<[2], [1], [1], [2], [0, 0, 0, 1, 1, 2], [0], [0]>} : vector<4x8x8xbf16>, vector<4x8x16xbf16>, vector<4x8x16xf32> -> vector<4x8x16xf32>
    "tpu.trace_stop"() : () -> ()
    %55 = tpu.concatenate %51, %54 in 2 : vector<4x8x16xf32>, vector<4x8x16xf32> -> vector<4x8x32xf32>
    %56 = vector.shape_cast %55 : vector<4x8x32xf32> to vector<32x32xf32>
    %c64 = arith.constant 64 : index
    %c0_17 = arith.constant 0 : index
    %57 = vector.load %arg2[%c64, %c0_17] : memref<288x128xbf16, #tpu.memory_space<vmem>>, vector<32x32xbf16>
    %58 = arith.truncf %56 : vector<32x32xf32> to vector<32x32xbf16>
    %cst_18 = arith.constant dense<0.000000e+00> : vector<32x32xf32>
    %59 = tpu.matmul %58, %57, %cst_18 {dimension_numbers = #tpu.dot_dimension_numbers<[1], [0], [0], [1], [0, 0, 1, 1], [], []>} : vector<32x32xbf16>, vector<32x32xbf16>, vector<32x32xf32> -> vector<32x32xf32>
    %c2 = arith.constant 2 : index
    %c0_19 = arith.constant 0 : index
    %60 = vector.load %arg3[%c2, %c0_19] : memref<16x128xf32, #tpu.memory_space<vmem>>, vector<1x32xf32>
    %61 = vector.broadcast %60 : vector<1x32xf32> to vector<32x32xf32>
    %62 = arith.addf %59, %61 : vector<32x32xf32>
    %63 = arith.addf %15, %62 : vector<32x32xf32>
    %c3 = arith.constant 3 : index
    %c0_20 = arith.constant 0 : index
    %64 = vector.load %arg3[%c3, %c0_20] : memref<16x128xf32, #tpu.memory_space<vmem>>, vector<1x32xf32>
    %c4 = arith.constant 4 : index
    %c0_21 = arith.constant 0 : index
    %65 = vector.load %arg3[%c4, %c0_21] : memref<16x128xf32, #tpu.memory_space<vmem>>, vector<1x32xf32>
    %cst_22 = arith.constant dense<0.000000e+00> : vector<32xf32>
    %66 = vector.multi_reduction <add>, %63, %cst_22 [1] : vector<32x32xf32> to vector<32xf32>
    %67 = vector.shape_cast %66 : vector<32xf32> to vector<32x1xf32>
    %cst_23 = arith.constant 3.200000e+01 : f32
    %68 = vector.broadcast %cst_23 : f32 to vector<32x1xf32>
    %69 = arith.divf %67, %68 : vector<32x1xf32>
    %70 = vector.broadcast %69 : vector<32x1xf32> to vector<32x32xf32>
    %71 = arith.subf %63, %70 : vector<32x32xf32>
    %72 = arith.mulf %71, %71 : vector<32x32xf32>
    %cst_24 = arith.constant dense<0.000000e+00> : vector<32xf32>
    %73 = vector.multi_reduction <add>, %72, %cst_24 [1] : vector<32x32xf32> to vector<32xf32>
    %74 = vector.shape_cast %73 : vector<32xf32> to vector<32x1xf32>
    %cst_25 = arith.constant 3.200000e+01 : f32
    %75 = vector.broadcast %cst_25 : f32 to vector<32x1xf32>
    %76 = arith.divf %74, %75 : vector<32x1xf32>
    %77 = vector.broadcast %69 : vector<32x1xf32> to vector<32x32xf32>
    %78 = arith.subf %63, %77 : vector<32x32xf32>
    %cst_26 = arith.constant 9.99999974E-6 : f32
    %79 = vector.broadcast %cst_26 : f32 to vector<32x1xf32>
    %80 = arith.addf %76, %79 : vector<32x1xf32>
    %81 = math.rsqrt %80 : vector<32x1xf32>
    %82 = vector.broadcast %81 : vector<32x1xf32> to vector<32x32xf32>
    %83 = arith.mulf %78, %82 : vector<32x32xf32>
    %84 = vector.broadcast %64 : vector<1x32xf32> to vector<32x32xf32>
    %85 = arith.mulf %83, %84 : vector<32x32xf32>
    %86 = vector.broadcast %65 : vector<1x32xf32> to vector<32x32xf32>
    %87 = arith.addf %85, %86 : vector<32x32xf32>
    %c96 = arith.constant 96 : index
    %c0_27 = arith.constant 0 : index
    %88 = vector.load %arg2[%c96, %c0_27] : memref<288x128xbf16, #tpu.memory_space<vmem>>, vector<32x64xbf16>
    %89 = arith.truncf %87 : vector<32x32xf32> to vector<32x32xbf16>
    %cst_28 = arith.constant dense<0.000000e+00> : vector<32x64xf32>
    %90 = tpu.matmul %89, %88, %cst_28 {dimension_numbers = #tpu.dot_dimension_numbers<[1], [0], [0], [1], [0, 0, 1, 1], [], []>} : vector<32x32xbf16>, vector<32x64xbf16>, vector<32x64xf32> -> vector<32x64xf32>
    %c5 = arith.constant 5 : index
    %c0_29 = arith.constant 0 : index
    %91 = vector.load %arg3[%c5, %c0_29] : memref<16x128xf32, #tpu.memory_space<vmem>>, vector<1x64xf32>
    %92 = vector.broadcast %91 : vector<1x64xf32> to vector<32x64xf32>
    %93 = arith.addf %90, %92 : vector<32x64xf32>
    %cst_30 = arith.constant 0.000000e+00 : f32
    %94 = vector.broadcast %cst_30 : f32 to vector<32x64xf32>
    %95 = arith.maximumf %93, %94 : vector<32x64xf32>
    %c128 = arith.constant 128 : index
    %c0_31 = arith.constant 0 : index
    %96 = vector.load %arg2[%c128, %c0_31] : memref<288x128xbf16, #tpu.memory_space<vmem>>, vector<64x32xbf16>
    %97 = arith.truncf %95 : vector<32x64xf32> to vector<32x64xbf16>
    %cst_32 = arith.constant dense<0.000000e+00> : vector<32x32xf32>
    %98 = tpu.matmul %97, %96, %cst_32 {dimension_numbers = #tpu.dot_dimension_numbers<[1], [0], [0], [1], [0, 0, 1, 1], [], []>} : vector<32x64xbf16>, vector<64x32xbf16>, vector<32x32xf32> -> vector<32x32xf32>
    %c6 = arith.constant 6 : index
    %c0_33 = arith.constant 0 : index
    %99 = vector.load %arg3[%c6, %c0_33] : memref<16x128xf32, #tpu.memory_space<vmem>>, vector<1x32xf32>
    %100 = vector.broadcast %99 : vector<1x32xf32> to vector<32x32xf32>
    %101 = arith.addf %98, %100 : vector<32x32xf32>
    %102 = arith.addf %87, %101 : vector<32x32xf32>
    %c7 = arith.constant 7 : index
    %c0_34 = arith.constant 0 : index
    %103 = vector.load %arg3[%c7, %c0_34] : memref<16x128xf32, #tpu.memory_space<vmem>>, vector<1x32xf32>
    %c8 = arith.constant 8 : index
    %c0_35 = arith.constant 0 : index
    %104 = vector.load %arg3[%c8, %c0_35] : memref<16x128xf32, #tpu.memory_space<vmem>>, vector<1x32xf32>
    %cst_36 = arith.constant dense<0.000000e+00> : vector<32xf32>
    %105 = vector.multi_reduction <add>, %102, %cst_36 [1] : vector<32x32xf32> to vector<32xf32>
    %106 = vector.shape_cast %105 : vector<32xf32> to vector<32x1xf32>
    %cst_37 = arith.constant 3.200000e+01 : f32
    %107 = vector.broadcast %cst_37 : f32 to vector<32x1xf32>
    %108 = arith.divf %106, %107 : vector<32x1xf32>
    %109 = vector.broadcast %108 : vector<32x1xf32> to vector<32x32xf32>
    %110 = arith.subf %102, %109 : vector<32x32xf32>
    %111 = arith.mulf %110, %110 : vector<32x32xf32>
    %cst_38 = arith.constant dense<0.000000e+00> : vector<32xf32>
    %112 = vector.multi_reduction <add>, %111, %cst_38 [1] : vector<32x32xf32> to vector<32xf32>
    %113 = vector.shape_cast %112 : vector<32xf32> to vector<32x1xf32>
    %cst_39 = arith.constant 3.200000e+01 : f32
    %114 = vector.broadcast %cst_39 : f32 to vector<32x1xf32>
    %115 = arith.divf %113, %114 : vector<32x1xf32>
    %116 = vector.broadcast %108 : vector<32x1xf32> to vector<32x32xf32>
    %117 = arith.subf %102, %116 : vector<32x32xf32>
    %cst_40 = arith.constant 9.99999974E-6 : f32
    %118 = vector.broadcast %cst_40 : f32 to vector<32x1xf32>
    %119 = arith.addf %115, %118 : vector<32x1xf32>
    %120 = math.rsqrt %119 : vector<32x1xf32>
    %121 = vector.broadcast %120 : vector<32x1xf32> to vector<32x32xf32>
    %122 = arith.mulf %117, %121 : vector<32x32xf32>
    %123 = vector.broadcast %103 : vector<1x32xf32> to vector<32x32xf32>
    %124 = arith.mulf %122, %123 : vector<32x32xf32>
    %125 = vector.broadcast %104 : vector<1x32xf32> to vector<32x32xf32>
    %126 = arith.addf %124, %125 : vector<32x32xf32>
    %127 = vector.shape_cast %126 : vector<32x32xf32> to vector<4x8x32xf32>
    %cst_41 = arith.constant dense<0.000000e+00> : vector<4x32xf32>
    %128 = vector.multi_reduction <add>, %127, %cst_41 [1] : vector<4x8x32xf32> to vector<4x32xf32>
    %cst_42 = arith.constant 8.000000e+00 : f32
    %129 = vector.broadcast %cst_42 : f32 to vector<4x32xf32>
    %130 = arith.divf %128, %129 : vector<4x32xf32>
    %c192 = arith.constant 192 : index
    %c0_43 = arith.constant 0 : index
    %131 = vector.load %arg2[%c192, %c0_43] : memref<288x128xbf16, #tpu.memory_space<vmem>>, vector<32x64xbf16>
    %132 = arith.truncf %130 : vector<4x32xf32> to vector<4x32xbf16>
    %cst_44 = arith.constant dense<0.000000e+00> : vector<4x64xf32>
    %133 = tpu.matmul %132, %131, %cst_44 {dimension_numbers = #tpu.dot_dimension_numbers<[1], [0], [0], [1], [0, 0, 1, 1], [], []>} : vector<4x32xbf16>, vector<32x64xbf16>, vector<4x64xf32> -> vector<4x64xf32>
    %c9 = arith.constant 9 : index
    %c0_45 = arith.constant 0 : index
    %134 = vector.load %arg3[%c9, %c0_45] : memref<16x128xf32, #tpu.memory_space<vmem>>, vector<1x64xf32>
    %135 = vector.broadcast %134 : vector<1x64xf32> to vector<4x64xf32>
    %136 = arith.addf %133, %135 : vector<4x64xf32>
    %cst_46 = arith.constant 0.000000e+00 : f32
    %137 = vector.broadcast %cst_46 : f32 to vector<4x64xf32>
    %138 = arith.maximumf %136, %137 : vector<4x64xf32>
    %c224 = arith.constant 224 : index
    %c0_47 = arith.constant 0 : index
    %139 = vector.load %arg2[%c224, %c0_47] : memref<288x128xbf16, #tpu.memory_space<vmem>>, vector<64x16xbf16>
    %140 = arith.truncf %138 : vector<4x64xf32> to vector<4x64xbf16>
    %cst_48 = arith.constant dense<0.000000e+00> : vector<4x16xf32>
    %141 = tpu.matmul %140, %139, %cst_48 {dimension_numbers = #tpu.dot_dimension_numbers<[1], [0], [0], [1], [0, 0, 1, 1], [], []>} : vector<4x64xbf16>, vector<64x16xbf16>, vector<4x16xf32> -> vector<4x16xf32>
    %c10 = arith.constant 10 : index
    %c0_49 = arith.constant 0 : index
    %142 = vector.load %arg3[%c10, %c0_49] : memref<16x128xf32, #tpu.memory_space<vmem>>, vector<1x16xf32>
    %143 = vector.broadcast %142 : vector<1x16xf32> to vector<4x16xf32>
    %144 = arith.addf %141, %143 : vector<4x16xf32>
    %145 = vector.extract_strided_slice %144 {offsets = [0, 0], sizes = [2, 16], strides = [1, 1]} : vector<4x16xf32> to vector<2x16xf32>
    %c0_50 = arith.constant 0 : index
    %c0_51 = arith.constant 0 : index
    %146 = vector.load %arg4[%c0_50, %c0_51] : memref<2x16xf32, #tpu.memory_space<vmem>>, vector<2x16xf32>
    tpu.vector_store %arg4[%c0_50, %c0_51], %145 {strides = array<i32>} : memref<2x16xf32, #tpu.memory_space<vmem>>, vector<2x16xf32>,
    %147 = vector.extract_strided_slice %144 {offsets = [2, 0], sizes = [2, 16], strides = [1, 1]} : vector<4x16xf32> to vector<2x16xf32>
    %c0_52 = arith.constant 0 : index
    %c0_53 = arith.constant 0 : index
    %148 = vector.load %arg5[%c0_52, %c0_53] : memref<2x16xf32, #tpu.memory_space<vmem>>, vector<2x16xf32>
    tpu.vector_store %arg5[%c0_52, %c0_53], %147 {strides = array<i32>} : memref<2x16xf32, #tpu.memory_space<vmem>>, vector<2x16xf32>,
    return
  }
}

</mosaic_0001>

<llo_original>
// kernel: tpu_custom_call.1
$region0: #{tpu_custom_call.1}
  #allocation0 [shape = 'u32[]', space=smem, size = 0x4, offset = 0x4, fixed_abs, tag = 'smem constant byte address 0x4 - core index']
  #allocation1 [shape = 'u32[144,128]{1,0:T(1,128)}', space=vmem, size = 0x12000, scoped, tag = 'internal scratch']
  %s0 = inlined_call_operand.vmem [shape: f32[16,4], index: 0, kind: input, shape index: {}]
  %s1 = inlined_call_operand.vmem [shape: f32[16,4], index: 1, kind: input, shape index: {}]
  %s2 = inlined_call_operand.hbm [shape: bf16[288,128], index: 2, kind: input, shape index: {}]
  %s3 = inlined_call_operand.vmem [shape: f32[16,128], index: 3, kind: input, shape index: {}]
  %s4 = inlined_call_operand.hbm [shape: f32[2,16], index: 4, kind: output, shape index: {0}]
  %s5 = inlined_call_operand.hbm [shape: f32[2,16], index: 5, kind: output, shape index: {1}]
  %6 = xla_tuple %s4, %s5
  %s7 = sld [smem:[#allocation0]]
  $region38: #{tpu_custom_call.1} parent=0
    _
  %s9 = ssub.s32 1, %s7
  %s10 = scalar_select 0, %s9, %s7
  $region1: #{tpu_custom_call.1} parent=0
    #allocation2 [shape = 'u8[73728]{0}', space=vmem, size = 0x12000, scoped, tag = 'input window, operand 2, single buffered']
    #allocation3 [shape = 's32[1]{0}', space=sflag, size = 0x4, scoped, tag = 'scoped memory for tpu_custom_call.1']
    #allocation4 [shape = 's32[1]{0}', space=sflag, size = 0x4, scoped, tag = 'scoped memory for tpu_custom_call.1']
    #allocation5 [shape = 'u8[1024]{0}', space=vmem, size = 0x400, scoped, tag = 'output window, operand 0, single buffered']
    #allocation6 [shape = 'u8[1024]{0}', space=vmem, size = 0x400, scoped, tag = 'output window, operand 1, single buffered']
    #allocation7 [shape = 's32[1]{0}', space=sflag, size = 0x4, scoped, tag = 'scoped memory for tpu_custom_call.1']
    %11 = vsyncpa [#allocation3], 0
    %12 = vsyncpa [#allocation4], 0
    %13 = vsyncpa [#allocation7], 0
    // Predicated region
    $region2: #{tpu_custom_call.1} parent=1 // pred_check
      _
    $region3: #{tpu_custom_call.1} parent=1 // pred_check_branch
      %15 = sbr.rel (0) target = $region5
    $region4: #{tpu_custom_call.1} parent=1 // pred_region
      _
    $region5: #{tpu_custom_call.1} parent=1 // pred_fallthru
      _
    // Predicated region
    $region6: #{tpu_custom_call.1} parent=1 // pred_check
      _
    $region7: #{tpu_custom_call.1} parent=1 // pred_check_branch
      %17 = sbr.rel (0) target = $region9
    $region8: #{tpu_custom_call.1} parent=1 // pred_region
      _
    $region9: #{tpu_custom_call.1} parent=1 // pred_fallthru
      _
    // Predicated region
    $region10: #{tpu_custom_call.1} parent=1 // pred_check
      _
    $region11: #{tpu_custom_call.1} parent=1 // pred_check_branch
      %19 = sbr.rel (0) target = $region13
    $region12: #{tpu_custom_call.1} parent=1 // pred_region
      %s21 = ssub.s32 2304, 2304
      %22 = vsyncadd [#allocation3], %s21
      %s23 = sshll.u32 [#allocation2], 4
      %s24 = int_to_ptr.vmem [resolvable:$true] %s23
      %29 = dma.hbm_to_vmem [thread:$0]  %s2, 2304, %s24, [#allocation3], 64, 64, 4
    $region13: #{tpu_custom_call.1} parent=1 // pred_fallthru
      _
    // Predicated region
    $region14: #{tpu_custom_call.1} parent=1 // pred_check
      _
    $region15: #{tpu_custom_call.1} parent=1 // pred_check_branch
      %31 = sbr.rel (0) target = $region17
    $region16: #{tpu_custom_call.1} parent=1 // pred_region
      _
    $region17: #{tpu_custom_call.1} parent=1 // pred_fallthru
      _
    // Predicated region
    $region18: #{tpu_custom_call.1} parent=1 // pred_check
      _
    $region19: #{tpu_custom_call.1} parent=1 // pred_check_branch
      %33 = sbr.rel (0) target = $region21
    $region20: #{tpu_custom_call.1} parent=1 // pred_region
      %34 = dma.done [#allocation3], 2304
    $region21: #{tpu_custom_call.1} parent=1 // pred_fallthru
      _
    %v36 = vld [vmem:[%s0] sm:$0xff]
    %v37 = vld [vmem:[%s0 + $0x8] sm:$0xff]
    %v38 = vld [vmem:[%s1] sm:$0xff]
    %v39 = vld [vmem:[%s1 + $0x8] sm:$0xff]
    %v40 = vld [vmem:[#allocation2] sm:$0x3]
    %v41 = vpack.c.bf16 %v37, %v36
    %v42 = vpack.c.bf16 %v39, %v38
    %v43 = vld [vmem:[%s3] sm:$0x1]
    %v44 = vlaneseq
    %v45 = vshrl.u32 %v44, 7
    %v46 = vsub.s32 0, %v45
    %v47 = vrot.slane %v43, %v46
    %vm48 = vcmask 31744
    %v50 = vsel %vm48, %v41, 0
    %v53 = vsel %vm48, %v42, 0
    %vm55 = vcmask 1041408
    %v57 = vsel %vm55, %v40, 0
    %59 = vmatprep.subr.bf16.mxu0 0
    %60 = vmatpush1.bf16.msra.mxu0 %v57
    %61 = vmatprep.subr.bf16.mxu0 0
    %62 = vmatpush1.bf16.msra.mxu0 0
    %63 = vmatprep.subr.bf16.mxu0 0
    %64 = vmatpush1.bf16.msra.mxu0 0
    %65 = vmatprep.subr.bf16.mxu0 0
    %66 = vmatpush1.bf16.msra.mxu0 0
    %67 = vmatprep.subr.bf16.mxu0 0
    %68 = vmatpush1.bf16.msra.mxu0 0
    %69 = vmatprep.subr.bf16.mxu0 0
    %70 = vmatpush1.bf16.msra.mxu0 0
    %71 = vmatprep.subr.bf16.mxu0 0
    %72 = vmatpush1.bf16.msra.mxu0 0
    %73 = vmatprep.subr.bf16.mxu0 0
    %74 = vmatpush1.bf16.msra.mxu0 0
    %75 = vmatprep.subr.bf16.mxu0 0
    %76 = vmatpush1.bf16.msra.mxu0 0
    %77 = vmatprep.subr.bf16.mxu0 0
    %78 = vmatpush1.bf16.msra.mxu0 0
    %79 = vmatprep.subr.bf16.mxu0 0
    %80 = vmatpush1.bf16.msra.mxu0 0
    %81 = vmatprep.subr.bf16.mxu0 0
    %82 = vmatpush1.bf16.msra.mxu0 0
    %83 = vmatprep.subr.bf16.mxu0 0
    %84 = vmatpush1.bf16.msra.mxu0 0
    %85 = vmatprep.subr.bf16.mxu0 0
    %86 = vmatpush1.bf16.msra.mxu0 0
    %87 = vmatprep.subr.bf16.mxu0 0
    %88 = vmatpush1.bf16.msra.mxu0 0
    %89 = vmatprep.subr.bf16.mxu0 0
    %90 = vmatpush1.bf16.msra.mxu0 0
    %91 = vmatprep.mubr.bf16.mxu0 0
    %92 = vmatmul.mubr.bf16.gmra.mrb[0].mxu0 %v50
    %v93 = vpop.f32.mrb[0].mxu0
    %v94 = vadd.f32 %v47, %v93
    %v95 = vpop.f32.mrb[0].mxu0
    %v96 = vpop.f32.mrb[0].mxu0
    %v97 = vadd.f32 %v47, %v96
    %v98 = vpop.f32.mrb[0].mxu0
    %99 = vmatprep.mubr.bf16.mxu0 0
    %100 = vmatmul.mubr.bf16.gmra.mrb[0].mxu0 %v53
    %v101 = vpop.f32.mrb[0].mxu0
    %v102 = vadd.f32 %v47, %v101
    %v103 = vpop.f32.mrb[0].mxu0
    %v104 = vpop.f32.mrb[0].mxu0
    %v105 = vadd.f32 %v47, %v104
    %v106 = vpop.f32.mrb[0].mxu0
    %107 = vdwg.mxu0
    %v108 = vld [vmem:[#allocation2 + $0x8] sm:$0xf]
    %v109 = vunpack.c.l.bf16 %v108
    %v110 = vadd.f32 %v94, %v109
    %v111 = vadd.f32 %v97, %v109
    %v112 = vadd.f32 %v102, %v109
    %v113 = vadd.f32 %v105, %v109
    %v114 = vld [vmem:[#allocation2 + $0x10] sm:$0xf]
    %v115 = vld [vmem:[#allocation2 + $0x14] sm:$0xf]
    %v116 = vld [vmem:[#allocation2 + $0x18] sm:$0xf]
    %v117 = vld [vmem:[#allocation2 + $0x1c] sm:$0xf]
    %v118 = vpack.c.bf16 %v111, %v110
    %v119 = vpack.c.bf16 %v113, %v112
    %v120 = vld [vmem:[%s3 + $0x1] sm:$0x1]
    %v121 = vlaneseq
    %v122 = vshrl.u32 %v121, 7
    %v123 = vsub.s32 0, %v122
    %v124 = vrot.slane %v120, %v123
    %v129 = vunpack.c.l.b16 %v114
    %v130 = vunpack.c.l.b16 %v115
    %v131 = vunpack.c.l.b16 %v116
    %v132 = vunpack.c.l.b16 %v117
    %v133 = vpack.c.b16 %v130, %v129
    %v134 = vpack.c.b16 %v132, %v131
    %vm137 = vcmask 261120
    %v139 = vsel %vm137, %v118, 0
    %v142 = vsel %vm137, %v119, 0
    %144 = vmatprep.subr.bf16.mxu0 0
    %145 = vmatpush1.bf16.msra.mxu0 %v133
    %146 = vmatprep.subr.bf16.mxu0 0
    %147 = vmatpush1.bf16.msra.mxu0 %v134
    %148 = vmatprep.subr.bf16.mxu0 0
    %149 = vmatpush1.bf16.msra.mxu0 0
    %150 = vmatprep.subr.bf16.mxu0 0
    %151 = vmatpush1.bf16.msra.mxu0 0
    %152 = vmatprep.subr.bf16.mxu0 0
    %153 = vmatpush1.bf16.msra.mxu0 0
    %154 = vmatprep.subr.bf16.mxu0 0
    %155 = vmatpush1.bf16.msra.mxu0 0
    %156 = vmatprep.subr.bf16.mxu0 0
    %157 = vmatpush1.bf16.msra.mxu0 0
    %158 = vmatprep.subr.bf16.mxu0 0
    %159 = vmatpush1.bf16.msra.mxu0 0
    %160 = vmatprep.subr.bf16.mxu0 0
    %161 = vmatpush1.bf16.msra.mxu0 0
    %162 = vmatprep.subr.bf16.mxu0 0
    %163 = vmatpush1.bf16.msra.mxu0 0
    %164 = vmatprep.subr.bf16.mxu0 0
    %165 = vmatpush1.bf16.msra.mxu0 0
    %166 = vmatprep.subr.bf16.mxu0 0
    %167 = vmatpush1.bf16.msra.mxu0 0
    %168 = vmatprep.subr.bf16.mxu0 0
    %169 = vmatpush1.bf16.msra.mxu0 0
    %170 = vmatprep.subr.bf16.mxu0 0
    %171 = vmatpush1.bf16.msra.mxu0 0
    %172 = vmatprep.subr.bf16.mxu0 0
    %173 = vmatpush1.bf16.msra.mxu0 0
    %174 = vmatprep.subr.bf16.mxu0 0
    %175 = vmatpush1.bf16.msra.mxu0 0
    %176 = vmatprep.mubr.bf16.mxu0 0
    %177 = vmatmul.mubr.bf16.gmra.mrb[0].mxu0 %v139
    %v178 = vpop.f32.mrb[0].mxu0
    %v179 = vadd.f32 %v124, %v178
    %v180 = vpop.f32.mrb[0].mxu0
    %v181 = vpop.f32.mrb[0].mxu0
    %v182 = vadd.f32 %v124, %v181
    %v183 = vpop.f32.mrb[0].mxu0
    %184 = vmatprep.mubr.bf16.mxu0 0
    %185 = vmatmul.mubr.bf16.gmra.mrb[0].mxu0 %v142
    %v186 = vpop.f32.mrb[0].mxu0
    %v187 = vadd.f32 %v124, %v186
    %v188 = vpop.f32.mrb[0].mxu0
    %v189 = vpop.f32.mrb[0].mxu0
    %v190 = vadd.f32 %v124, %v189
    %v191 = vpop.f32.mrb[0].mxu0
    %192 = vdwg.mxu0
    %v193 = vpack.c.bf16 %v179, %v179
    %v194 = vpack.c.bf16 %v182, %v182
    %v195 = vpack.c.bf16 %v187, %v187
    %v196 = vpack.c.bf16 %v190, %v190
    %198 = vrot.lane.b32.xlu0 %v193, 96
    %v199 = vpop.permute.xlu0 %198
    %vm200 = vcmask 130048
    %v202 = vsel %vm200, %v193, 0
    %v205 = vsel %vm200, %v199, 0
    %207 = vmatprep.subr.bf16.mxu0 0
    %208 = vmatpush1.bf16.xpose.msra.mxu0 %v205
    %209 = vmatprep.subr.bf16.mxu0 0
    %210 = vmatpush1.bf16.xpose.msra.mxu0 0
    %211 = vmatprep.subr.bf16.mxu0 0
    %212 = vmatpush1.bf16.xpose.msra.mxu0 0
    %213 = vmatprep.subr.bf16.mxu0 0
    %214 = vmatpush1.bf16.xpose.msra.mxu0 0
    %215 = vmatprep.subr.bf16.mxu0 0
    %216 = vmatpush1.bf16.xpose.msra.mxu0 0
    %217 = vmatprep.subr.bf16.mxu0 0
    %218 = vmatpush1.bf16.xpose.msra.mxu0 0
    %219 = vmatprep.subr.bf16.mxu0 0
    %220 = vmatpush1.bf16.xpose.msra.mxu0 0
    %221 = vmatprep.subr.bf16.mxu0 0
    %222 = vmatpush1.bf16.xpose.msra.mxu0 0
    %223 = vmatprep.subr.bf16.mxu0 0
    %224 = vmatpush1.bf16.xpose.msra.mxu0 0
    %225 = vmatprep.subr.bf16.mxu0 0
    %226 = vmatpush1.bf16.xpose.msra.mxu0 0
    %227 = vmatprep.subr.bf16.mxu0 0
    %228 = vmatpush1.bf16.xpose.msra.mxu0 0
    %229 = vmatprep.subr.bf16.mxu0 0
    %230 = vmatpush1.bf16.xpose.msra.mxu0 0
    %231 = vmatprep.subr.bf16.mxu0 0
    %232 = vmatpush1.bf16.xpose.msra.mxu0 0
    %233 = vmatprep.subr.bf16.mxu0 0
    %234 = vmatpush1.bf16.xpose.msra.mxu0 0
    %235 = vmatprep.subr.bf16.mxu0 0
    %236 = vmatpush1.bf16.xpose.msra.mxu0 0
    %237 = vmatprep.subr.bf16.mxu0 0
    %238 = vmatpush1.bf16.xpose.msra.mxu0 0
    %239 = vmatprep.mubr.bf16.mxu0 0
    %240 = vmatmul.mubr.bf16.gmra.mrb[0].mxu0 %v202
    %v241 = vpop.f32.mrb[0].mxu0
    %v242 = vadd.f32 0.0, %v241
    %v243 = vpop.f32.mrb[0].mxu0
    %v244 = vpop.f32.mrb[0].mxu0
    %v245 = vpop.f32.mrb[0].mxu0
    %246 = vdwg.mxu0
    %248 = vrot.lane.b32.xlu0 %v194, 96
    %v249 = vpop.permute.xlu0 %248
    %v251 = vsel %vm200, %v194, 0
    %v254 = vsel %vm200, %v249, 0
    %256 = vmatprep.subr.bf16.mxu0 0
    %257 = vmatpush1.bf16.xpose.msra.mxu0 %v254
    %258 = vmatprep.subr.bf16.mxu0 0
    %259 = vmatpush1.bf16.xpose.msra.mxu0 0
    %260 = vmatprep.subr.bf16.mxu0 0
    %261 = vmatpush1.bf16.xpose.msra.mxu0 0
    %262 = vmatprep.subr.bf16.mxu0 0
    %263 = vmatpush1.bf16.xpose.msra.mxu0 0
    %264 = vmatprep.subr.bf16.mxu0 0
    %265 = vmatpush1.bf16.xpose.msra.mxu0 0
    %266 = vmatprep.subr.bf16.mxu0 0
    %267 = vmatpush1.bf16.xpose.msra.mxu0 0
    %268 = vmatprep.subr.bf16.mxu0 0
    %269 = vmatpush1.bf16.xpose.msra.mxu0 0
    %270 = vmatprep.subr.bf16.mxu0 0
    %271 = vmatpush1.bf16.xpose.msra.mxu0 0
    %272 = vmatprep.subr.bf16.mxu0 0
    %273 = vmatpush1.bf16.xpose.msra.mxu0 0
    %274 = vmatprep.subr.bf16.mxu0 0
    %275 = vmatpush1.bf16.xpose.msra.mxu0 0
    %276 = vmatprep.subr.bf16.mxu0 0
    %277 = vmatpush1.bf16.xpose.msra.mxu0 0
    %278 = vmatprep.subr.bf16.mxu0 0
    %279 = vmatpush1.bf16.xpose.msra.mxu0 0
    %280 = vmatprep.subr.bf16.mxu0 0
    %281 = vmatpush1.bf16.xpose.msra.mxu0 0
    %282 = vmatprep.subr.bf16.mxu0 0
    %283 = vmatpush1.bf16.xpose.msra.mxu0 0
    %284 = vmatprep.subr.bf16.mxu0 0
    %285 = vmatpush1.bf16.xpose.msra.mxu0 0
    %286 = vmatprep.subr.bf16.mxu0 0
    %287 = vmatpush1.bf16.xpose.msra.mxu0 0
    %288 = vmatprep.mubr.bf16.mxu0 0
    %289 = vmatmul.mubr.bf16.gmra.mrb[0].mxu0 %v251
    %v290 = vpop.f32.mrb[0].mxu0
    %v291 = vadd.f32 0.0, %v290
    %v292 = vpop.f32.mrb[0].mxu0
    %v293 = vpop.f32.mrb[0].mxu0
    %v294 = vpop.f32.mrb[0].mxu0
    %295 = vdwg.mxu0
    %297 = vrot.lane.b32.xlu0 %v195, 96
    %v298 = vpop.permute.xlu0 %297
    %v300 = vsel %vm200, %v195, 0
    %v303 = vsel %vm200, %v298, 0
    %305 = vmatprep.subr.bf16.mxu0 0
    %306 = vmatpush1.bf16.xpose.msra.mxu0 %v303
    %307 = vmatprep.subr.bf16.mxu0 0
    %308 = vmatpush1.bf16.xpose.msra.mxu0 0
    %309 = vmatprep.subr.bf16.mxu0 0
    %310 = vmatpush1.bf16.xpose.msra.mxu0 0
    %311 = vmatprep.subr.bf16.mxu0 0
    %312 = vmatpush1.bf16.xpose.msra.mxu0 0
    %313 = vmatprep.subr.bf16.mxu0 0
    %314 = vmatpush1.bf16.xpose.msra.mxu0 0
    %315 = vmatprep.subr.bf16.mxu0 0
    %316 = vmatpush1.bf16.xpose.msra.mxu0 0
    %317 = vmatprep.subr.bf16.mxu0 0
    %318 = vmatpush1.bf16.xpose.msra.mxu0 0
    %319 = vmatprep.subr.bf16.mxu0 0
    %320 = vmatpush1.bf16.xpose.msra.mxu0 0
    %321 = vmatprep.subr.bf16.mxu0 0
    %322 = vmatpush1.bf16.xpose.msra.mxu0 0
    %323 = vmatprep.subr.bf16.mxu0 0
    %324 = vmatpush1.bf16.xpose.msra.mxu0 0
    %325 = vmatprep.subr.bf16.mxu0 0
    %326 = vmatpush1.bf16.xpose.msra.mxu0 0
    %327 = vmatprep.subr.bf16.mxu0 0
    %328 = vmatpush1.bf16.xpose.msra.mxu0 0
    %329 = vmatprep.subr.bf16.mxu0 0
    %330 = vmatpush1.bf16.xpose.msra.mxu0 0
    %331 = vmatprep.subr.bf16.mxu0 0
    %332 = vmatpush1.bf16.xpose.msra.mxu0 0
    %333 = vmatprep.subr.bf16.mxu0 0
    %334 = vmatpush1.bf16.xpose.msra.mxu0 0
    %335 = vmatprep.subr.bf16.mxu0 0
    %336 = vmatpush1.bf16.xpose.msra.mxu0 0
    %337 = vmatprep.mubr.bf16.mxu0 0
    %338 = vmatmul.mubr.bf16.gmra.mrb[0].mxu0 %v300
    %v339 = vpop.f32.mrb[0].mxu0
    %v340 = vadd.f32 0.0, %v339
    %v341 = vpop.f32.mrb[0].mxu0
    %v342 = vpop.f32.mrb[0].mxu0
    %v343 = vpop.f32.mrb[0].mxu0
    %344 = vdwg.mxu0
    %346 = vrot.lane.b32.xlu0 %v196, 96
    %v347 = vpop.permute.xlu0 %346
    %v349 = vsel %vm200, %v196, 0
    %v352 = vsel %vm200, %v347, 0
    %354 = vmatprep.subr.bf16.mxu0 0
    %355 = vmatpush1.bf16.xpose.msra.mxu0 %v352
    %356 = vmatprep.subr.bf16.mxu0 0
    %357 = vmatpush1.bf16.xpose.msra.mxu0 0
    %358 = vmatprep.subr.bf16.mxu0 0
    %359 = vmatpush1.bf16.xpose.msra.mxu0 0
    %360 = vmatprep.subr.bf16.mxu0 0
    %361 = vmatpush1.bf16.xpose.msra.mxu0 0
    %362 = vmatprep.subr.bf16.mxu0 0
    %363 = vmatpush1.bf16.xpose.msra.mxu0 0
    %364 = vmatprep.subr.bf16.mxu0 0
    %365 = vmatpush1.bf16.xpose.msra.mxu0 0
    %366 = vmatprep.subr.bf16.mxu0 0
    %367 = vmatpush1.bf16.xpose.msra.mxu0 0
    %368 = vmatprep.subr.bf16.mxu0 0
    %369 = vmatpush1.bf16.xpose.msra.mxu0 0
    %370 = vmatprep.subr.bf16.mxu0 0
    %371 = vmatpush1.bf16.xpose.msra.mxu0 0
    %372 = vmatprep.subr.bf16.mxu0 0
    %373 = vmatpush1.bf16.xpose.msra.mxu0 0
    %374 = vmatprep.subr.bf16.mxu0 0
    %375 = vmatpush1.bf16.xpose.msra.mxu0 0
    %376 = vmatprep.subr.bf16.mxu0 0
    %377 = vmatpush1.bf16.xpose.msra.mxu0 0
    %378 = vmatprep.subr.bf16.mxu0 0
    %379 = vmatpush1.bf16.xpose.msra.mxu0 0
    %380 = vmatprep.subr.bf16.mxu0 0
    %381 = vmatpush1.bf16.xpose.msra.mxu0 0
    %382 = vmatprep.subr.bf16.mxu0 0
    %383 = vmatpush1.bf16.xpose.msra.mxu0 0
    %384 = vmatprep.subr.bf16.mxu0 0
    %385 = vmatpush1.bf16.xpose.msra.mxu0 0
    %386 = vmatprep.mubr.bf16.mxu0 0
    %387 = vmatmul.mubr.bf16.gmra.mrb[0].mxu0 %v349
    %v388 = vpop.f32.mrb[0].mxu0
    %v389 = vadd.f32 0.0, %v388
    %v390 = vpop.f32.mrb[0].mxu0
    %v391 = vpop.f32.mrb[0].mxu0
    %v392 = vpop.f32.mrb[0].mxu0
    %393 = vdwg.mxu0
    %394 = vrot.lane.b32.xlu0 %v193, 112
    %v395 = vpop.permute.xlu0 %394
    %396 = vrot.lane.b32.xlu0 %v193, 80
    %v397 = vpop.permute.xlu0 %396
    %v399 = vsel %vm200, %v395, 0
    %v402 = vsel %vm200, %v397, 0
    %404 = vmatprep.subr.bf16.mxu0 0
    %405 = vmatpush1.bf16.xpose.msra.mxu0 %v402
    %406 = vmatprep.subr.bf16.mxu0 0
    %407 = vmatpush1.bf16.xpose.msra.mxu0 0
    %408 = vmatprep.subr.bf16.mxu0 0
    %409 = vmatpush1.bf16.xpose.msra.mxu0 0
    %410 = vmatprep.subr.bf16.mxu0 0
    %411 = vmatpush1.bf16.xpose.msra.mxu0 0
    %412 = vmatprep.subr.bf16.mxu0 0
    %413 = vmatpush1.bf16.xpose.msra.mxu0 0
    %414 = vmatprep.subr.bf16.mxu0 0
    %415 = vmatpush1.bf16.xpose.msra.mxu0 0
    %416 = vmatprep.subr.bf16.mxu0 0
    %417 = vmatpush1.bf16.xpose.msra.mxu0 0
    %418 = vmatprep.subr.bf16.mxu0 0
    %419 = vmatpush1.bf16.xpose.msra.mxu0 0
    %420 = vmatprep.subr.bf16.mxu0 0
    %421 = vmatpush1.bf16.xpose.msra.mxu0 0
    %422 = vmatprep.subr.bf16.mxu0 0
    %423 = vmatpush1.bf16.xpose.msra.mxu0 0
    %424 = vmatprep.subr.bf16.mxu0 0
    %425 = vmatpush1.bf16.xpose.msra.mxu0 0
    %426 = vmatprep.subr.bf16.mxu0 0
    %427 = vmatpush1.bf16.xpose.msra.mxu0 0
    %428 = vmatprep.subr.bf16.mxu0 0
    %429 = vmatpush1.bf16.xpose.msra.mxu0 0
    %430 = vmatprep.subr.bf16.mxu0 0
    %431 = vmatpush1.bf16.xpose.msra.mxu0 0
    %432 = vmatprep.subr.bf16.mxu0 0
    %433 = vmatpush1.bf16.xpose.msra.mxu0 0
    %434 = vmatprep.subr.bf16.mxu0 0
    %435 = vmatpush1.bf16.xpose.msra.mxu0 0
    %436 = vmatprep.mubr.bf16.mxu0 0
    %437 = vmatmul.mubr.bf16.gmra.mrb[0].mxu0 %v399
    %v438 = vpop.f32.mrb[0].mxu0
    %v439 = vadd.f32 0.0, %v438
    %v440 = vpop.f32.mrb[0].mxu0
    %v441 = vpop.f32.mrb[0].mxu0
    %v442 = vpop.f32.mrb[0].mxu0
    %443 = vdwg.mxu0
    %444 = vrot.lane.b32.xlu0 %v194, 112
    %v445 = vpop.permute.xlu0 %444
    %446 = vrot.lane.b32.xlu0 %v194, 80
    %v447 = vpop.permute.xlu0 %446
    %v449 = vsel %vm200, %v445, 0
    %v452 = vsel %vm200, %v447, 0
    %454 = vmatprep.subr.bf16.mxu0 0
    %455 = vmatpush1.bf16.xpose.msra.mxu0 %v452
    %456 = vmatprep.subr.bf16.mxu0 0
    %457 = vmatpush1.bf16.xpose.msra.mxu0 0
    %458 = vmatprep.subr.bf16.mxu0 0
    %459 = vmatpush1.bf16.xpose.msra.mxu0 0
    %460 = vmatprep.subr.bf16.mxu0 0
    %461 = vmatpush1.bf16.xpose.msra.mxu0 0
    %462 = vmatprep.subr.bf16.mxu0 0
    %463 = vmatpush1.bf16.xpose.msra.mxu0 0
    %464 = vmatprep.subr.bf16.mxu0 0
    %465 = vmatpush1.bf16.xpose.msra.mxu0 0
    %466 = vmatprep.subr.bf16.mxu0 0
    %467 = vmatpush1.bf16.xpose.msra.mxu0 0
    %468 = vmatprep.subr.bf16.mxu0 0
    %469 = vmatpush1.bf16.xpose.msra.mxu0 0
    %470 = vmatprep.subr.bf16.mxu0 0
    %471 = vmatpush1.bf16.xpose.msra.mxu0 0
    %472 = vmatprep.subr.bf16.mxu0 0
    %473 = vmatpush1.bf16.xpose.msra.mxu0 0
    %474 = vmatprep.subr.bf16.mxu0 0
    %475 = vmatpush1.bf16.xpose.msra.mxu0 0
    %476 = vmatprep.subr.bf16.mxu0 0
    %477 = vmatpush1.bf16.xpose.msra.mxu0 0
    %478 = vmatprep.subr.bf16.mxu0 0
    %479 = vmatpush1.bf16.xpose.msra.mxu0 0
    %480 = vmatprep.subr.bf16.mxu0 0
    %481 = vmatpush1.bf16.xpose.msra.mxu0 0
    %482 = vmatprep.subr.bf16.mxu0 0
    %483 = vmatpush1.bf16.xpose.msra.mxu0 0
    %484 = vmatprep.subr.bf16.mxu0 0
    %485 = vmatpush1.bf16.xpose.msra.mxu0 0
    %486 = vmatprep.mubr.bf16.mxu0 0
    %487 = vmatmul.mubr.bf16.gmra.mrb[0].mxu0 %v449
    %v488 = vpop.f32.mrb[0].mxu0
    %v489 = vadd.f32 0.0, %v488
    %v490 = vpop.f32.mrb[0].mxu0
    %v491 = vpop.f32.mrb[0].mxu0
    %v492 = vpop.f32.mrb[0].mxu0
    %493 = vdwg.mxu0
    %494 = vrot.lane.b32.xlu0 %v195, 112
    %v495 = vpop.permute.xlu0 %494
    %496 = vrot.lane.b32.xlu0 %v195, 80
    %v497 = vpop.permute.xlu0 %496
    %v499 = vsel %vm200, %v495, 0
    %v502 = vsel %vm200, %v497, 0
    %504 = vmatprep.subr.bf16.mxu0 0
    %505 = vmatpush1.bf16.xpose.msra.mxu0 %v502
    %506 = vmatprep.subr.bf16.mxu0 0
    %507 = vmatpush1.bf16.xpose.msra.mxu0 0
    %508 = vmatprep.subr.bf16.mxu0 0
    %509 = vmatpush1.bf16.xpose.msra.mxu0 0
    %510 = vmatprep.subr.bf16.mxu0 0
    %511 = vmatpush1.bf16.xpose.msra.mxu0 0
    %512 = vmatprep.subr.bf16.mxu0 0
    %513 = vmatpush1.bf16.xpose.msra.mxu0 0
    %514 = vmatprep.subr.bf16.mxu0 0
    %515 = vmatpush1.bf16.xpose.msra.mxu0 0
    %516 = vmatprep.subr.bf16.mxu0 0
    %517 = vmatpush1.bf16.xpose.msra.mxu0 0
    %518 = vmatprep.subr.bf16.mxu0 0
    %519 = vmatpush1.bf16.xpose.msra.mxu0 0
    %520 = vmatprep.subr.bf16.mxu0 0
    %521 = vmatpush1.bf16.xpose.msra.mxu0 0
    %522 = vmatprep.subr.bf16.mxu0 0
    %523 = vmatpush1.bf16.xpose.msra.mxu0 0
    %524 = vmatprep.subr.bf16.mxu0 0
    %525 = vmatpush1.bf16.xpose.msra.mxu0 0
    %526 = vmatprep.subr.bf16.mxu0 0
    %527 = vmatpush1.bf16.xpose.msra.mxu0 0
    %528 = vmatprep.subr.bf16.mxu0 0
    %529 = vmatpush1.bf16.xpose.msra.mxu0 0
    %530 = vmatprep.subr.bf16.mxu0 0
    %531 = vmatpush1.bf16.xpose.msra.mxu0 0
    %532 = vmatprep.subr.bf16.mxu0 0
    %533 = vmatpush1.bf16.xpose.msra.mxu0 0
    %534 = vmatprep.subr.bf16.mxu0 0
    %535 = vmatpush1.bf16.xpose.msra.mxu0 0
    %536 = vmatprep.mubr.bf16.mxu0 0
    %537 = vmatmul.mubr.bf16.gmra.mrb[0].mxu0 %v499
    %v538 = vpop.f32.mrb[0].mxu0
    %v539 = vadd.f32 0.0, %v538
    %v540 = vpop.f32.mrb[0].mxu0
    %v541 = vpop.f32.mrb[0].mxu0
    %v542 = vpop.f32.mrb[0].mxu0
    %543 = vdwg.mxu0
    %544 = vrot.lane.b32.xlu0 %v196, 112
    %v545 = vpop.permute.xlu0 %544
    %546 = vrot.lane.b32.xlu0 %v196, 80
    %v547 = vpop.permute.xlu0 %546
    %v549 = vsel %vm200, %v545, 0
    %v552 = vsel %vm200, %v547, 0
    %554 = vmatprep.subr.bf16.mxu0 0
    %555 = vmatpush1.bf16.xpose.msra.mxu0 %v552
    %556 = vmatprep.subr.bf16.mxu0 0
    %557 = vmatpush1.bf16.xpose.msra.mxu0 0
    %558 = vmatprep.subr.bf16.mxu0 0
    %559 = vmatpush1.bf16.xpose.msra.mxu0 0
    %560 = vmatprep.subr.bf16.mxu0 0
    %561 = vmatpush1.bf16.xpose.msra.mxu0 0
    %562 = vmatprep.subr.bf16.mxu0 0
    %563 = vmatpush1.bf16.xpose.msra.mxu0 0
    %564 = vmatprep.subr.bf16.mxu0 0
    %565 = vmatpush1.bf16.xpose.msra.mxu0 0
    %566 = vmatprep.subr.bf16.mxu0 0
    %567 = vmatpush1.bf16.xpose.msra.mxu0 0
    %568 = vmatprep.subr.bf16.mxu0 0
    %569 = vmatpush1.bf16.xpose.msra.mxu0 0
    %570 = vmatprep.subr.bf16.mxu0 0
    %571 = vmatpush1.bf16.xpose.msra.mxu0 0
    %572 = vmatprep.subr.bf16.mxu0 0
    %573 = vmatpush1.bf16.xpose.msra.mxu0 0
    %574 = vmatprep.subr.bf16.mxu0 0
    %575 = vmatpush1.bf16.xpose.msra.mxu0 0
    %576 = vmatprep.subr.bf16.mxu0 0
    %577 = vmatpush1.bf16.xpose.msra.mxu0 0
    %578 = vmatprep.subr.bf16.mxu0 0
    %579 = vmatpush1.bf16.xpose.msra.mxu0 0
    %580 = vmatprep.subr.bf16.mxu0 0
    %581 = vmatpush1.bf16.xpose.msra.mxu0 0
    %582 = vmatprep.subr.bf16.mxu0 0
    %583 = vmatpush1.bf16.xpose.msra.mxu0 0
    %584 = vmatprep.subr.bf16.mxu0 0
    %585 = vmatpush1.bf16.xpose.msra.mxu0 0
    %586 = vmatprep.mubr.bf16.mxu0 0
    %587 = vmatmul.mubr.bf16.gmra.mrb[0].mxu0 %v549
    %v588 = vpop.f32.mrb[0].mxu0
    %v589 = vadd.f32 0.0, %v588
    %v590 = vpop.f32.mrb[0].mxu0
    %v591 = vpop.f32.mrb[0].mxu0
    %v592 = vpop.f32.mrb[0].mxu0
    %593 = vdwg.mxu0
    %vm594 = vcmask 64512
    %v595 = vsel %vm594, %v242, -inf
    %596 = vmax.xlane.f32.xlu0 %v595
    %v597 = vpop.xlane.xlu0 %596
    %v598 = vsel %vm594, %v291, -inf
    %599 = vmax.xlane.f32.xlu0 %v598
    %v600 = vpop.xlane.xlu0 %599
    %v601 = vsel %vm594, %v340, -inf
    %602 = vmax.xlane.f32.xlu0 %v601
    %v603 = vpop.xlane.xlu0 %602
    %v604 = vsel %vm594, %v389, -inf
    %605 = vmax.xlane.f32.xlu0 %v604
    %v606 = vpop.xlane.xlu0 %605
    %v607 = vsel %vm594, %v439, -inf
    %608 = vmax.xlane.f32.xlu0 %v607
    %v609 = vpop.xlane.xlu0 %608
    %v610 = vsel %vm594, %v489, -inf
    %611 = vmax.xlane.f32.xlu0 %v610
    %v612 = vpop.xlane.xlu0 %611
    %v613 = vsel %vm594, %v539, -inf
    %614 = vmax.xlane.f32.xlu0 %v613
    %v615 = vpop.xlane.xlu0 %614
    %v616 = vsel %vm594, %v589, -inf
    %617 = vmax.xlane.f32.xlu0 %v616
    %v618 = vpop.xlane.xlu0 %617
    %v619 = vsub.f32 %v242, %v597
    %v620 = vsub.f32 %v291, %v600
    %v621 = vsub.f32 %v340, %v603
    %v622 = vsub.f32 %v389, %v606
    %v623 = vsub.f32 %v439, %v609
    %v624 = vsub.f32 %v489, %v612
    %v625 = vsub.f32 %v539, %v615
    %v626 = vsub.f32 %v589, %v618
    %v627 = vmul.f32 %v619, 1.442695
    %v628 = vpow.pop %v627
    %v629 = vmul.f32 %v620, 1.442695
    %v630 = vpow.pop %v629
    %v631 = vmul.f32 %v621, 1.442695
    %v632 = vpow.pop %v631
    %v633 = vmul.f32 %v622, 1.442695
    %v634 = vpow.pop %v633
    %v635 = vmul.f32 %v623, 1.442695
    %v636 = vpow.pop %v635
    %v637 = vmul.f32 %v624, 1.442695
    %v638 = vpow.pop %v637
    %v639 = vmul.f32 %v625, 1.442695
    %v640 = vpow.pop %v639
    %v641 = vmul.f32 %v626, 1.442695
    %v642 = vpow.pop %v641
    %v643 = vsel %vm594, %v628, 0.0
    %644 = vadd.xlane.f32.xlu0 %v643
    %v645 = vpop.xlane.xlu0 %644
    %v646 = vsel %vm594, %v630, 0.0
    %647 = vadd.xlane.f32.xlu0 %v646
    %v648 = vpop.xlane.xlu0 %647
    %v649 = vsel %vm594, %v632, 0.0
    %650 = vadd.xlane.f32.xlu0 %v649
    %v651 = vpop.xlane.xlu0 %650
    %v652 = vsel %vm594, %v634, 0.0
    %653 = vadd.xlane.f32.xlu0 %v652
    %v654 = vpop.xlane.xlu0 %653
    %v655 = vsel %vm594, %v636, 0.0
    %656 = vadd.xlane.f32.xlu0 %v655
    %v657 = vpop.xlane.xlu0 %656
    %v658 = vsel %vm594, %v638, 0.0
    %659 = vadd.xlane.f32.xlu0 %v658
    %v660 = vpop.xlane.xlu0 %659
    %v661 = vsel %vm594, %v640, 0.0
    %662 = vadd.xlane.f32.xlu0 %v661
    %v663 = vpop.xlane.xlu0 %662
    %v664 = vsel %vm594, %v642, 0.0
    %665 = vadd.xlane.f32.xlu0 %v664
    %v666 = vpop.xlane.xlu0 %665
    %v667 = vrcp.pop %v645
    %v668 = vrcp.pop %v648
    %v669 = vrcp.pop %v651
    %v670 = vrcp.pop %v654
    %v671 = vrcp.pop %v657
    %v672 = vrcp.pop %v660
    %v673 = vrcp.pop %v663
    %v674 = vrcp.pop %v666
    %v675 = vmul.f32 %v628, %v667
    %v676 = vmul.f32 %v630, %v668
    %v677 = vmul.f32 %v632, %v669
    %v678 = vmul.f32 %v634, %v670
    %v679 = vmul.f32 %v636, %v671
    %v680 = vmul.f32 %v638, %v672
    %v681 = vmul.f32 %v640, %v673
    %v682 = vmul.f32 %v642, %v674
    %v683 = vpack.c.bf16 %v675, %v675
    %v684 = vpack.c.bf16 %v676, %v676
    %v685 = vpack.c.bf16 %v677, %v677
    %v686 = vpack.c.bf16 %v678, %v678
    %v687 = vpack.c.bf16 %v679, %v679
    %v688 = vpack.c.bf16 %v680, %v680
    %v689 = vpack.c.bf16 %v681, %v681
    %v690 = vpack.c.bf16 %v682, %v682
    %691 = vrot.lane.b32.xlu0 %v193, 64
    %v692 = vpop.permute.xlu0 %691
    %v694 = vsel %vm594, %v683, 0
    %vm696 = vcmask 1043456
    %v698 = vsel %vm696, %v692, 0
    %700 = vmatprep.subr.bf16.mxu0 0
    %701 = vmatpush1.bf16.msra.mxu0 %v698
    %702 = vmatprep.subr.bf16.mxu0 0
    %703 = vmatpush1.bf16.msra.mxu0 0
    %704 = vmatprep.subr.bf16.mxu0 0
    %705 = vmatpush1.bf16.msra.mxu0 0
    %706 = vmatprep.subr.bf16.mxu0 0
    %707 = vmatpush1.bf16.msra.mxu0 0
    %708 = vmatprep.subr.bf16.mxu0 0
    %709 = vmatpush1.bf16.msra.mxu0 0
    %710 = vmatprep.subr.bf16.mxu0 0
    %711 = vmatpush1.bf16.msra.mxu0 0
    %712 = vmatprep.subr.bf16.mxu0 0
    %713 = vmatpush1.bf16.msra.mxu0 0
    %714 = vmatprep.subr.bf16.mxu0 0
    %715 = vmatpush1.bf16.msra.mxu0 0
    %716 = vmatprep.subr.bf16.mxu0 0
    %717 = vmatpush1.bf16.msra.mxu0 0
    %718 = vmatprep.subr.bf16.mxu0 0
    %719 = vmatpush1.bf16.msra.mxu0 0
    %720 = vmatprep.subr.bf16.mxu0 0
    %721 = vmatpush1.bf16.msra.mxu0 0
    %722 = vmatprep.subr.bf16.mxu0 0
    %723 = vmatpush1.bf16.msra.mxu0 0
    %724 = vmatprep.subr.bf16.mxu0 0
    %725 = vmatpush1.bf16.msra.mxu0 0
    %726 = vmatprep.subr.bf16.mxu0 0
    %727 = vmatpush1.bf16.msra.mxu0 0
    %728 = vmatprep.subr.bf16.mxu0 0
    %729 = vmatpush1.bf16.msra.mxu0 0
    %730 = vmatprep.subr.bf16.mxu0 0
    %731 = vmatpush1.bf16.msra.mxu0 0
    %732 = vmatprep.mubr.bf16.mxu0 0
    %733 = vmatmul.mubr.bf16.gmra.mrb[0].mxu0 %v694
    %v734 = vpop.f32.mrb[0].mxu0
    %v735 = vadd.f32 0.0, %v734
    %v736 = vpop.f32.mrb[0].mxu0
    %v737 = vpop.f32.mrb[0].mxu0
    %v738 = vpop.f32.mrb[0].mxu0
    %739 = vdwg.mxu0
    %740 = vrot.lane.b32.xlu0 %v194, 64
    %v741 = vpop.permute.xlu0 %740
    %v743 = vsel %vm594, %v684, 0
    %v746 = vsel %vm696, %v741, 0
    %748 = vmatprep.subr.bf16.mxu0 0
    %749 = vmatpush1.bf16.msra.mxu0 %v746
    %750 = vmatprep.subr.bf16.mxu0 0
    %751 = vmatpush1.bf16.msra.mxu0 0
    %752 = vmatprep.subr.bf16.mxu0 0
    %753 = vmatpush1.bf16.msra.mxu0 0
    %754 = vmatprep.subr.bf16.mxu0 0
    %755 = vmatpush1.bf16.msra.mxu0 0
    %756 = vmatprep.subr.bf16.mxu0 0
    %757 = vmatpush1.bf16.msra.mxu0 0
    %758 = vmatprep.subr.bf16.mxu0 0
    %759 = vmatpush1.bf16.msra.mxu0 0
    %760 = vmatprep.subr.bf16.mxu0 0
    %761 = vmatpush1.bf16.msra.mxu0 0
    %762 = vmatprep.subr.bf16.mxu0 0
    %763 = vmatpush1.bf16.msra.mxu0 0
    %764 = vmatprep.subr.bf16.mxu0 0
    %765 = vmatpush1.bf16.msra.mxu0 0
    %766 = vmatprep.subr.bf16.mxu0 0
    %767 = vmatpush1.bf16.msra.mxu0 0
    %768 = vmatprep.subr.bf16.mxu0 0
    %769 = vmatpush1.bf16.msra.mxu0 0
    %770 = vmatprep.subr.bf16.mxu0 0
    %771 = vmatpush1.bf16.msra.mxu0 0
    %772 = vmatprep.subr.bf16.mxu0 0
    %773 = vmatpush1.bf16.msra.mxu0 0
    %774 = vmatprep.subr.bf16.mxu0 0
    %775 = vmatpush1.bf16.msra.mxu0 0
    %776 = vmatprep.subr.bf16.mxu0 0
    %777 = vmatpush1.bf16.msra.mxu0 0
    %778 = vmatprep.subr.bf16.mxu0 0
    %779 = vmatpush1.bf16.msra.mxu0 0
    %780 = vmatprep.mubr.bf16.mxu0 0
    %781 = vmatmul.mubr.bf16.gmra.mrb[0].mxu0 %v743
    %v782 = vpop.f32.mrb[0].mxu0
    %v783 = vadd.f32 0.0, %v782
    %v784 = vpop.f32.mrb[0].mxu0
    %v785 = vpop.f32.mrb[0].mxu0
    %v786 = vpop.f32.mrb[0].mxu0
    %787 = vdwg.mxu0
    %788 = vrot.lane.b32.xlu0 %v195, 64
    %v789 = vpop.permute.xlu0 %788
    %v791 = vsel %vm594, %v685, 0
    %v794 = vsel %vm696, %v789, 0
    %796 = vmatprep.subr.bf16.mxu0 0
    %797 = vmatpush1.bf16.msra.mxu0 %v794
    %798 = vmatprep.subr.bf16.mxu0 0
    %799 = vmatpush1.bf16.msra.mxu0 0
    %800 = vmatprep.subr.bf16.mxu0 0
    %801 = vmatpush1.bf16.msra.mxu0 0
    %802 = vmatprep.subr.bf16.mxu0 0
    %803 = vmatpush1.bf16.msra.mxu0 0
    %804 = vmatprep.subr.bf16.mxu0 0
    %805 = vmatpush1.bf16.msra.mxu0 0
    %806 = vmatprep.subr.bf16.mxu0 0
    %807 = vmatpush1.bf16.msra.mxu0 0
    %808 = vmatprep.subr.bf16.mxu0 0
    %809 = vmatpush1.bf16.msra.mxu0 0
    %810 = vmatprep.subr.bf16.mxu0 0
    %811 = vmatpush1.bf16.msra.mxu0 0
    %812 = vmatprep.subr.bf16.mxu0 0
    %813 = vmatpush1.bf16.msra.mxu0 0
    %814 = vmatprep.subr.bf16.mxu0 0
    %815 = vmatpush1.bf16.msra.mxu0 0
    %816 = vmatprep.subr.bf16.mxu0 0
    %817 = vmatpush1.bf16.msra.mxu0 0
    %818 = vmatprep.subr.bf16.mxu0 0
    %819 = vmatpush1.bf16.msra.mxu0 0
    %820 = vmatprep.subr.bf16.mxu0 0
    %821 = vmatpush1.bf16.msra.mxu0 0
    %822 = vmatprep.subr.bf16.mxu0 0
    %823 = vmatpush1.bf16.msra.mxu0 0
    %824 = vmatprep.subr.bf16.mxu0 0
    %825 = vmatpush1.bf16.msra.mxu0 0
    %826 = vmatprep.subr.bf16.mxu0 0
    %827 = vmatpush1.bf16.msra.mxu0 0
    %828 = vmatprep.mubr.bf16.mxu0 0
    %829 = vmatmul.mubr.bf16.gmra.mrb[0].mxu0 %v791
    %v830 = vpop.f32.mrb[0].mxu0
    %v831 = vadd.f32 0.0, %v830
    %v832 = vpop.f32.mrb[0].mxu0
    %v833 = vpop.f32.mrb[0].mxu0
    %v834 = vpop.f32.mrb[0].mxu0
    %835 = vdwg.mxu0
    %836 = vrot.lane.b32.xlu0 %v196, 64
    %v837 = vpop.permute.xlu0 %836
    %v839 = vsel %vm594, %v686, 0
    %v842 = vsel %vm696, %v837, 0
    %844 = vmatprep.subr.bf16.mxu0 0
    %845 = vmatpush1.bf16.msra.mxu0 %v842
    %846 = vmatprep.subr.bf16.mxu0 0
    %847 = vmatpush1.bf16.msra.mxu0 0
    %848 = vmatprep.subr.bf16.mxu0 0
    %849 = vmatpush1.bf16.msra.mxu0 0
    %850 = vmatprep.subr.bf16.mxu0 0
    %851 = vmatpush1.bf16.msra.mxu0 0
    %852 = vmatprep.subr.bf16.mxu0 0
    %853 = vmatpush1.bf16.msra.mxu0 0
    %854 = vmatprep.subr.bf16.mxu0 0
    %855 = vmatpush1.bf16.msra.mxu0 0
    %856 = vmatprep.subr.bf16.mxu0 0
    %857 = vmatpush1.bf16.msra.mxu0 0
    %858 = vmatprep.subr.bf16.mxu0 0
    %859 = vmatpush1.bf16.msra.mxu0 0
    %860 = vmatprep.subr.bf16.mxu0 0
    %861 = vmatpush1.bf16.msra.mxu0 0
    %862 = vmatprep.subr.bf16.mxu0 0
    %863 = vmatpush1.bf16.msra.mxu0 0
    %864 = vmatprep.subr.bf16.mxu0 0
    %865 = vmatpush1.bf16.msra.mxu0 0
    %866 = vmatprep.subr.bf16.mxu0 0
    %867 = vmatpush1.bf16.msra.mxu0 0
    %868 = vmatprep.subr.bf16.mxu0 0
    %869 = vmatpush1.bf16.msra.mxu0 0
    %870 = vmatprep.subr.bf16.mxu0 0
    %871 = vmatpush1.bf16.msra.mxu0 0
    %872 = vmatprep.subr.bf16.mxu0 0
    %873 = vmatpush1.bf16.msra.mxu0 0
    %874 = vmatprep.subr.bf16.mxu0 0
    %875 = vmatpush1.bf16.msra.mxu0 0
    %876 = vmatprep.mubr.bf16.mxu0 0
    %877 = vmatmul.mubr.bf16.gmra.mrb[0].mxu0 %v839
    %v878 = vpop.f32.mrb[0].mxu0
    %v879 = vadd.f32 0.0, %v878
    %v880 = vpop.f32.mrb[0].mxu0
    %v881 = vpop.f32.mrb[0].mxu0
    %v882 = vpop.f32.mrb[0].mxu0
    %883 = vdwg.mxu0
    %884 = vrot.lane.b32.xlu0 %v193, 48
    %v885 = vpop.permute.xlu0 %884
    %v887 = vsel %vm594, %v687, 0
    %v890 = vsel %vm696, %v885, 0
    %892 = vmatprep.subr.bf16.mxu0 0
    %893 = vmatpush1.bf16.msra.mxu0 %v890
    %894 = vmatprep.subr.bf16.mxu0 0
    %895 = vmatpush1.bf16.msra.mxu0 0
    %896 = vmatprep.subr.bf16.mxu0 0
    %897 = vmatpush1.bf16.msra.mxu0 0
    %898 = vmatprep.subr.bf16.mxu0 0
    %899 = vmatpush1.bf16.msra.mxu0 0
    %900 = vmatprep.subr.bf16.mxu0 0
    %901 = vmatpush1.bf16.msra.mxu0 0
    %902 = vmatprep.subr.bf16.mxu0 0
    %903 = vmatpush1.bf16.msra.mxu0 0
    %904 = vmatprep.subr.bf16.mxu0 0
    %905 = vmatpush1.bf16.msra.mxu0 0
    %906 = vmatprep.subr.bf16.mxu0 0
    %907 = vmatpush1.bf16.msra.mxu0 0
    %908 = vmatprep.subr.bf16.mxu0 0
    %909 = vmatpush1.bf16.msra.mxu0 0
    %910 = vmatprep.subr.bf16.mxu0 0
    %911 = vmatpush1.bf16.msra.mxu0 0
    %912 = vmatprep.subr.bf16.mxu0 0
    %913 = vmatpush1.bf16.msra.mxu0 0
    %914 = vmatprep.subr.bf16.mxu0 0
    %915 = vmatpush1.bf16.msra.mxu0 0
    %916 = vmatprep.subr.bf16.mxu0 0
    %917 = vmatpush1.bf16.msra.mxu0 0
    %918 = vmatprep.subr.bf16.mxu0 0
    %919 = vmatpush1.bf16.msra.mxu0 0
    %920 = vmatprep.subr.bf16.mxu0 0
    %921 = vmatpush1.bf16.msra.mxu0 0
    %922 = vmatprep.subr.bf16.mxu0 0
    %923 = vmatpush1.bf16.msra.mxu0 0
    %924 = vmatprep.mubr.bf16.mxu0 0
    %925 = vmatmul.mubr.bf16.gmra.mrb[0].mxu0 %v887
    %v926 = vpop.f32.mrb[0].mxu0
    %v927 = vadd.f32 0.0, %v926
    %v928 = vpop.f32.mrb[0].mxu0
    %v929 = vpop.f32.mrb[0].mxu0
    %v930 = vpop.f32.mrb[0].mxu0
    %931 = vdwg.mxu0
    %932 = vrot.lane.b32.xlu0 %v194, 48
    %v933 = vpop.permute.xlu0 %932
    %v935 = vsel %vm594, %v688, 0
    %v938 = vsel %vm696, %v933, 0
    %940 = vmatprep.subr.bf16.mxu0 0
    %941 = vmatpush1.bf16.msra.mxu0 %v938
    %942 = vmatprep.subr.bf16.mxu0 0
    %943 = vmatpush1.bf16.msra.mxu0 0
    %944 = vmatprep.subr.bf16.mxu0 0
    %945 = vmatpush1.bf16.msra.mxu0 0
    %946 = vmatprep.subr.bf16.mxu0 0
    %947 = vmatpush1.bf16.msra.mxu0 0
    %948 = vmatprep.subr.bf16.mxu0 0
    %949 = vmatpush1.bf16.msra.mxu0 0
    %950 = vmatprep.subr.bf16.mxu0 0
    %951 = vmatpush1.bf16.msra.mxu0 0
    %952 = vmatprep.subr.bf16.mxu0 0
    %953 = vmatpush1.bf16.msra.mxu0 0
    %954 = vmatprep.subr.bf16.mxu0 0
    %955 = vmatpush1.bf16.msra.mxu0 0
    %956 = vmatprep.subr.bf16.mxu0 0
    %957 = vmatpush1.bf16.msra.mxu0 0
    %958 = vmatprep.subr.bf16.mxu0 0
    %959 = vmatpush1.bf16.msra.mxu0 0
    %960 = vmatprep.subr.bf16.mxu0 0
    %961 = vmatpush1.bf16.msra.mxu0 0
    %962 = vmatprep.subr.bf16.mxu0 0
    %963 = vmatpush1.bf16.msra.mxu0 0
    %964 = vmatprep.subr.bf16.mxu0 0
    %965 = vmatpush1.bf16.msra.mxu0 0
    %966 = vmatprep.subr.bf16.mxu0 0
    %967 = vmatpush1.bf16.msra.mxu0 0
    %968 = vmatprep.subr.bf16.mxu0 0
    %969 = vmatpush1.bf16.msra.mxu0 0
    %970 = vmatprep.subr.bf16.mxu0 0
    %971 = vmatpush1.bf16.msra.mxu0 0
    %972 = vmatprep.mubr.bf16.mxu0 0
    %973 = vmatmul.mubr.bf16.gmra.mrb[0].mxu0 %v935
    %v974 = vpop.f32.mrb[0].mxu0
    %v975 = vadd.f32 0.0, %v974
    %v976 = vpop.f32.mrb[0].mxu0
    %v977 = vpop.f32.mrb[0].mxu0
    %v978 = vpop.f32.mrb[0].mxu0
    %979 = vdwg.mxu0
    %980 = vrot.lane.b32.xlu0 %v195, 48
    %v981 = vpop.permute.xlu0 %980
    %v983 = vsel %vm594, %v689, 0
    %v986 = vsel %vm696, %v981, 0
    %988 = vmatprep.subr.bf16.mxu0 0
    %989 = vmatpush1.bf16.msra.mxu0 %v986
    %990 = vmatprep.subr.bf16.mxu0 0
    %991 = vmatpush1.bf16.msra.mxu0 0
    %992 = vmatprep.subr.bf16.mxu0 0
    %993 = vmatpush1.bf16.msra.mxu0 0
    %994 = vmatprep.subr.bf16.mxu0 0
    %995 = vmatpush1.bf16.msra.mxu0 0
    %996 = vmatprep.subr.bf16.mxu0 0
    %997 = vmatpush1.bf16.msra.mxu0 0
    %998 = vmatprep.subr.bf16.mxu0 0
    %999 = vmatpush1.bf16.msra.mxu0 0
    %1000 = vmatprep.subr.bf16.mxu0 0
    %1001 = vmatpush1.bf16.msra.mxu0 0
    %1002 = vmatprep.subr.bf16.mxu0 0
    %1003 = vmatpush1.bf16.msra.mxu0 0
    %1004 = vmatprep.subr.bf16.mxu0 0
    %1005 = vmatpush1.bf16.msra.mxu0 0
    %1006 = vmatprep.subr.bf16.mxu0 0
    %1007 = vmatpush1.bf16.msra.mxu0 0
    %1008 = vmatprep.subr.bf16.mxu0 0
    %1009 = vmatpush1.bf16.msra.mxu0 0
    %1010 = vmatprep.subr.bf16.mxu0 0
    %1011 = vmatpush1.bf16.msra.mxu0 0
    %1012 = vmatprep.subr.bf16.mxu0 0
    %1013 = vmatpush1.bf16.msra.mxu0 0
    %1014 = vmatprep.subr.bf16.mxu0 0
    %1015 = vmatpush1.bf16.msra.mxu0 0
    %1016 = vmatprep.subr.bf16.mxu0 0
    %1017 = vmatpush1.bf16.msra.mxu0 0
    %1018 = vmatprep.subr.bf16.mxu0 0
    %1019 = vmatpush1.bf16.msra.mxu0 0
    %1020 = vmatprep.mubr.bf16.mxu0 0
    %1021 = vmatmul.mubr.bf16.gmra.mrb[0].mxu0 %v983
    %v1022 = vpop.f32.mrb[0].mxu0
    %v1023 = vadd.f32 0.0, %v1022
    %v1024 = vpop.f32.mrb[0].mxu0
    %v1025 = vpop.f32.mrb[0].mxu0
    %v1026 = vpop.f32.mrb[0].mxu0
    %1027 = vdwg.mxu0
    %1028 = vrot.lane.b32.xlu0 %v196, 48
    %v1029 = vpop.permute.xlu0 %1028
    %v1031 = vsel %vm594, %v690, 0
    %v1034 = vsel %vm696, %v1029, 0
    %1036 = vmatprep.subr.bf16.mxu0 0
    %1037 = vmatpush1.bf16.msra.mxu0 %v1034
    %1038 = vmatprep.subr.bf16.mxu0 0
    %1039 = vmatpush1.bf16.msra.mxu0 0
    %1040 = vmatprep.subr.bf16.mxu0 0
    %1041 = vmatpush1.bf16.msra.mxu0 0
    %1042 = vmatprep.subr.bf16.mxu0 0
    %1043 = vmatpush1.bf16.msra.mxu0 0
    %1044 = vmatprep.subr.bf16.mxu0 0
    %1045 = vmatpush1.bf16.msra.mxu0 0
    %1046 = vmatprep.subr.bf16.mxu0 0
    %1047 = vmatpush1.bf16.msra.mxu0 0
    %1048 = vmatprep.subr.bf16.mxu0 0
    %1049 = vmatpush1.bf16.msra.mxu0 0
    %1050 = vmatprep.subr.bf16.mxu0 0
    %1051 = vmatpush1.bf16.msra.mxu0 0
    %1052 = vmatprep.subr.bf16.mxu0 0
    %1053 = vmatpush1.bf16.msra.mxu0 0
    %1054 = vmatprep.subr.bf16.mxu0 0
    %1055 = vmatpush1.bf16.msra.mxu0 0
    %1056 = vmatprep.subr.bf16.mxu0 0
    %1057 = vmatpush1.bf16.msra.mxu0 0
    %1058 = vmatprep.subr.bf16.mxu0 0
    %1059 = vmatpush1.bf16.msra.mxu0 0
    %1060 = vmatprep.subr.bf16.mxu0 0
    %1061 = vmatpush1.bf16.msra.mxu0 0
    %1062 = vmatprep.subr.bf16.mxu0 0
    %1063 = vmatpush1.bf16.msra.mxu0 0
    %1064 = vmatprep.subr.bf16.mxu0 0
    %1065 = vmatpush1.bf16.msra.mxu0 0
    %1066 = vmatprep.subr.bf16.mxu0 0
    %1067 = vmatpush1.bf16.msra.mxu0 0
    %1068 = vmatprep.mubr.bf16.mxu0 0
    %1069 = vmatmul.mubr.bf16.gmra.mrb[0].mxu0 %v1031
    %v1070 = vpop.f32.mrb[0].mxu0
    %v1071 = vadd.f32 0.0, %v1070
    %v1072 = vpop.f32.mrb[0].mxu0
    %v1073 = vpop.f32.mrb[0].mxu0
    %v1074 = vpop.f32.mrb[0].mxu0
    %1075 = vdwg.mxu0
    %1080 = vrot.lane.b32.xlu0 %v927, 16
    %v1081 = vpop.permute.xlu0 %1080
    %1082 = vrot.lane.b32.xlu0 %v975, 16
    %v1083 = vpop.permute.xlu0 %1082
    %1084 = vrot.lane.b32.xlu0 %v1023, 16
    %v1085 = vpop.permute.xlu0 %1084
    %1086 = vrot.lane.b32.xlu0 %v1071, 16
    %v1087 = vpop.permute.xlu0 %1086
    %v1092 = vsel %vm200, %v735, %v1081
    %v1093 = vsel %vm200, %v783, %v1083
    %v1094 = vsel %vm200, %v831, %v1085
    %v1095 = vsel %vm200, %v879, %v1087
    %v1096 = vld [vmem:[#allocation2 + $0x20] sm:$0xf]
    %v1097 = vld [vmem:[#allocation2 + $0x24] sm:$0xf]
    %v1098 = vld [vmem:[#allocation2 + $0x28] sm:$0xf]
    %v1099 = vld [vmem:[#allocation2 + $0x2c] sm:$0xf]
    %v1100 = vpack.c.bf16 %v1093, %v1092
    %v1101 = vpack.c.bf16 %v1095, %v1094
    %v1102 = vld [vmem:[%s3 + $0x2] sm:$0x1]
    %v1103 = vlaneseq
    %v1104 = vshrl.u32 %v1103, 7
    %v1105 = vsub.s32 0, %v1104
    %v1106 = vrot.slane %v1102, %v1105
    %v1111 = vunpack.c.l.b16 %v1096
    %v1112 = vunpack.c.l.b16 %v1097
    %v1113 = vunpack.c.l.b16 %v1098
    %v1114 = vunpack.c.l.b16 %v1099
    %v1115 = vpack.c.b16 %v1112, %v1111
    %v1116 = vpack.c.b16 %v1114, %v1113
    %v1120 = vsel %vm137, %v1100, 0
    %v1123 = vsel %vm137, %v1101, 0
    %1125 = vmatprep.subr.bf16.mxu0 0
    %1126 = vmatpush1.bf16.msra.mxu0 %v1115
    %1127 = vmatprep.subr.bf16.mxu0 0
    %1128 = vmatpush1.bf16.msra.mxu0 %v1116
    %1129 = vmatprep.subr.bf16.mxu0 0
    %1130 = vmatpush1.bf16.msra.mxu0 0
    %1131 = vmatprep.subr.bf16.mxu0 0
    %1132 = vmatpush1.bf16.msra.mxu0 0
    %1133 = vmatprep.subr.bf16.mxu0 0
    %1134 = vmatpush1.bf16.msra.mxu0 0
    %1135 = vmatprep.subr.bf16.mxu0 0
    %1136 = vmatpush1.bf16.msra.mxu0 0
    %1137 = vmatprep.subr.bf16.mxu0 0
    %1138 = vmatpush1.bf16.msra.mxu0 0
    %1139 = vmatprep.subr.bf16.mxu0 0
    %1140 = vmatpush1.bf16.msra.mxu0 0
    %1141 = vmatprep.subr.bf16.mxu0 0
    %1142 = vmatpush1.bf16.msra.mxu0 0
    %1143 = vmatprep.subr.bf16.mxu0 0
    %1144 = vmatpush1.bf16.msra.mxu0 0
    %1145 = vmatprep.subr.bf16.mxu0 0
    %1146 = vmatpush1.bf16.msra.mxu0 0
    %1147 = vmatprep.subr.bf16.mxu0 0
    %1148 = vmatpush1.bf16.msra.mxu0 0
    %1149 = vmatprep.subr.bf16.mxu0 0
    %1150 = vmatpush1.bf16.msra.mxu0 0
    %1151 = vmatprep.subr.bf16.mxu0 0
    %1152 = vmatpush1.bf16.msra.mxu0 0
    %1153 = vmatprep.subr.bf16.mxu0 0
    %1154 = vmatpush1.bf16.msra.mxu0 0
    %1155 = vmatprep.subr.bf16.mxu0 0
    %1156 = vmatpush1.bf16.msra.mxu0 0
    %1157 = vmatprep.mubr.bf16.mxu0 0
    %1158 = vmatmul.mubr.bf16.gmra.mrb[0].mxu0 %v1120
    %v1159 = vpop.f32.mrb[0].mxu0
    %v1160 = vadd.f32 %v1106, %v1159
    %v1161 = vpop.f32.mrb[0].mxu0
    %v1162 = vpop.f32.mrb[0].mxu0
    %v1163 = vadd.f32 %v1106, %v1162
    %v1164 = vpop.f32.mrb[0].mxu0
    %1165 = vmatprep.mubr.bf16.mxu0 0
    %1166 = vmatmul.mubr.bf16.gmra.mrb[0].mxu0 %v1123
    %v1167 = vpop.f32.mrb[0].mxu0
    %v1168 = vadd.f32 %v1106, %v1167
    %v1169 = vpop.f32.mrb[0].mxu0
    %v1170 = vpop.f32.mrb[0].mxu0
    %v1171 = vadd.f32 %v1106, %v1170
    %v1172 = vpop.f32.mrb[0].mxu0
    %1173 = vdwg.mxu0
    %v1174 = vadd.f32 %v110, %v1160
    %v1175 = vadd.f32 %v111, %v1163
    %v1176 = vadd.f32 %v112, %v1168
    %v1177 = vadd.f32 %v113, %v1171
    %v1178 = vld [vmem:[%s3 + $0x3] sm:$0x1]
    %v1179 = vld [vmem:[%s3 + $0x4] sm:$0x1]
    %v1180 = vsel %vm137, %v1174, 0.0
    %1181 = vadd.xlane.f32.xlu0 %v1180
    %v1182 = vpop.xlane.xlu0 %1181
    %v1183 = vsel %vm137, %v1175, 0.0
    %1184 = vadd.xlane.f32.xlu0 %v1183
    %v1185 = vpop.xlane.xlu0 %1184
    %v1186 = vsel %vm137, %v1176, 0.0
    %1187 = vadd.xlane.f32.xlu0 %v1186
    %v1188 = vpop.xlane.xlu0 %1187
    %v1189 = vsel %vm137, %v1177, 0.0
    %1190 = vadd.xlane.f32.xlu0 %v1189
    %v1191 = vpop.xlane.xlu0 %1190
    %v1192 = vrcp.pop 32.0
    %v1193 = vmul.f32 %v1182, %v1192
    %v1194 = vmul.f32 %v1185, %v1192
    %v1195 = vmul.f32 %v1188, %v1192
    %v1196 = vmul.f32 %v1191, %v1192
    %v1197 = vsub.f32 %v1174, %v1193
    %v1198 = vsub.f32 %v1175, %v1194
    %v1199 = vsub.f32 %v1176, %v1195
    %v1200 = vsub.f32 %v1177, %v1196
    %v1201 = vmul.f32 %v1197, %v1197
    %v1202 = vmul.f32 %v1198, %v1198
    %v1203 = vmul.f32 %v1199, %v1199
    %v1204 = vmul.f32 %v1200, %v1200
    %v1205 = vsel %vm137, %v1201, 0.0
    %1206 = vadd.xlane.f32.xlu0 %v1205
    %v1207 = vpop.xlane.xlu0 %1206
    %v1208 = vsel %vm137, %v1202, 0.0
    %1209 = vadd.xlane.f32.xlu0 %v1208
    %v1210 = vpop.xlane.xlu0 %1209
    %v1211 = vsel %vm137, %v1203, 0.0
    %1212 = vadd.xlane.f32.xlu0 %v1211
    %v1213 = vpop.xlane.xlu0 %1212
    %v1214 = vsel %vm137, %v1204, 0.0
    %1215 = vadd.xlane.f32.xlu0 %v1214
    %v1216 = vpop.xlane.xlu0 %1215
    %v1217 = vmul.f32 %v1207, %v1192
    %v1218 = vmul.f32 %v1210, %v1192
    %v1219 = vmul.f32 %v1213, %v1192
    %v1220 = vmul.f32 %v1216, %v1192
    %v1221 = vadd.f32 %v1217, 1e-05
    %v1222 = vadd.f32 %v1218, 1e-05
    %v1223 = vadd.f32 %v1219, 1e-05
    %v1224 = vadd.f32 %v1220, 1e-05
    %v1225 = vrsqrt.pop %v1221
    %v1226 = vrsqrt.pop %v1222
    %v1227 = vrsqrt.pop %v1223
    %v1228 = vrsqrt.pop %v1224
    %v1229 = vmul.f32 %v1197, %v1225
    %v1230 = vmul.f32 %v1198, %v1226
    %v1231 = vmul.f32 %v1199, %v1227
    %v1232 = vmul.f32 %v1200, %v1228
    %v1233 = vlaneseq
    %v1234 = vshrl.u32 %v1233, 7
    %v1235 = vsub.s32 0, %v1234
    %v1236 = vrot.slane %v1178, %v1235
    %v1237 = vmul.f32 %v1229, %v1236
    %v1238 = vmul.f32 %v1230, %v1236
    %v1239 = vmul.f32 %v1231, %v1236
    %v1240 = vmul.f32 %v1232, %v1236
    %v1241 = vlaneseq
    %v1242 = vshrl.u32 %v1241, 7
    %v1243 = vsub.s32 0, %v1242
    %v1244 = vrot.slane %v1179, %v1243
    %v1245 = vadd.f32 %v1237, %v1244
    %v1246 = vadd.f32 %v1238, %v1244
    %v1247 = vadd.f32 %v1239, %v1244
    %v1248 = vadd.f32 %v1240, %v1244
    %v1249 = vld [vmem:[#allocation2 + $0x30] sm:$0xf]
    %v1250 = vld [vmem:[#allocation2 + $0x34] sm:$0xf]
    %v1251 = vld [vmem:[#allocation2 + $0x38] sm:$0xf]
    %v1252 = vld [vmem:[#allocation2 + $0x3c] sm:$0xf]
    %v1253 = vpack.c.bf16 %v1246, %v1245
    %v1254 = vpack.c.bf16 %v1248, %v1247
    %v1255 = vld [vmem:[%s3 + $0x5] sm:$0x1]
    %v1256 = vlaneseq
    %v1257 = vshrl.u32 %v1256, 7
    %v1258 = vsub.s32 0, %v1257
    %v1259 = vrot.slane %v1255, %v1258
    %v1264 = vunpack.c.l.b16 %v1249
    %v1265 = vunpack.c.l.b16 %v1250
    %v1266 = vunpack.c.l.b16 %v1251
    %v1267 = vunpack.c.l.b16 %v1252
    %v1268 = vpack.c.b16 %v1265, %v1264
    %v1269 = vpack.c.b16 %v1267, %v1266
    %v1273 = vsel %vm137, %v1253, 0
    %v1276 = vsel %vm137, %v1254, 0
    %1278 = vmatprep.subr.bf16.mxu0 0
    %1279 = vmatpush1.bf16.msra.mxu0 %v1268
    %1280 = vmatprep.subr.bf16.mxu0 0
    %1281 = vmatpush1.bf16.msra.mxu0 %v1269
    %1282 = vmatprep.subr.bf16.mxu0 0
    %1283 = vmatpush1.bf16.msra.mxu0 0
    %1284 = vmatprep.subr.bf16.mxu0 0
    %1285 = vmatpush1.bf16.msra.mxu0 0
    %1286 = vmatprep.subr.bf16.mxu0 0
    %1287 = vmatpush1.bf16.msra.mxu0 0
    %1288 = vmatprep.subr.bf16.mxu0 0
    %1289 = vmatpush1.bf16.msra.mxu0 0
    %1290 = vmatprep.subr.bf16.mxu0 0
    %1291 = vmatpush1.bf16.msra.mxu0 0
    %1292 = vmatprep.subr.bf16.mxu0 0
    %1293 = vmatpush1.bf16.msra.mxu0 0
    %1294 = vmatprep.subr.bf16.mxu0 0
    %1295 = vmatpush1.bf16.msra.mxu0 0
    %1296 = vmatprep.subr.bf16.mxu0 0
    %1297 = vmatpush1.bf16.msra.mxu0 0
    %1298 = vmatprep.subr.bf16.mxu0 0
    %1299 = vmatpush1.bf16.msra.mxu0 0
    %1300 = vmatprep.subr.bf16.mxu0 0
    %1301 = vmatpush1.bf16.msra.mxu0 0
    %1302 = vmatprep.subr.bf16.mxu0 0
    %1303 = vmatpush1.bf16.msra.mxu0 0
    %1304 = vmatprep.subr.bf16.mxu0 0
    %1305 = vmatpush1.bf16.msra.mxu0 0
    %1306 = vmatprep.subr.bf16.mxu0 0
    %1307 = vmatpush1.bf16.msra.mxu0 0
    %1308 = vmatprep.subr.bf16.mxu0 0
    %1309 = vmatpush1.bf16.msra.mxu0 0
    %1310 = vmatprep.mubr.bf16.mxu0 0
    %1311 = vmatmul.mubr.bf16.gmra.mrb[0].mxu0 %v1273
    %v1312 = vpop.f32.mrb[0].mxu0
    %v1313 = vadd.f32 %v1259, %v1312
    %v1314 = vpop.f32.mrb[0].mxu0
    %v1315 = vpop.f32.mrb[0].mxu0
    %v1316 = vadd.f32 %v1259, %v1315
    %v1317 = vpop.f32.mrb[0].mxu0
    %1318 = vmatprep.mubr.bf16.mxu0 0
    %1319 = vmatmul.mubr.bf16.gmra.mrb[0].mxu0 %v1276
    %v1320 = vpop.f32.mrb[0].mxu0
    %v1321 = vadd.f32 %v1259, %v1320
    %v1322 = vpop.f32.mrb[0].mxu0
    %v1323 = vpop.f32.mrb[0].mxu0
    %v1324 = vadd.f32 %v1259, %v1323
    %v1325 = vpop.f32.mrb[0].mxu0
    %1326 = vdwg.mxu0
    %v1327 = vmax.f32 %v1313, 0.0
    %v1328 = vmax.f32 %v1316, 0.0
    %v1329 = vmax.f32 %v1321, 0.0
    %v1330 = vmax.f32 %v1324, 0.0
    %v1331 = vld [vmem:[#allocation2 + $0x40] sm:$0xf]
    %v1332 = vld [vmem:[#allocation2 + $0x44] sm:$0xf]
    %v1333 = vld [vmem:[#allocation2 + $0x48] sm:$0xf]
    %v1334 = vld [vmem:[#allocation2 + $0x4c] sm:$0xf]
    %v1335 = vld [vmem:[#allocation2 + $0x50] sm:$0xf]
    %v1336 = vld [vmem:[#allocation2 + $0x54] sm:$0xf]
    %v1337 = vld [vmem:[#allocation2 + $0x58] sm:$0xf]
    %v1338 = vld [vmem:[#allocation2 + $0x5c] sm:$0xf]
    %v1339 = vpack.c.bf16 %v1328, %v1327
    %v1340 = vpack.c.bf16 %v1330, %v1329
    %v1341 = vld [vmem:[%s3 + $0x6] sm:$0x1]
    %v1342 = vlaneseq
    %v1343 = vshrl.u32 %v1342, 7
    %v1344 = vsub.s32 0, %v1343
    %v1345 = vrot.slane %v1341, %v1344
    %v1354 = vunpack.c.l.b16 %v1331
    %v1355 = vunpack.c.l.b16 %v1332
    %v1356 = vunpack.c.l.b16 %v1333
    %v1357 = vunpack.c.l.b16 %v1334
    %v1358 = vunpack.c.l.b16 %v1335
    %v1359 = vunpack.c.l.b16 %v1336
    %v1360 = vunpack.c.l.b16 %v1337
    %v1361 = vunpack.c.l.b16 %v1338
    %v1362 = vpack.c.b16 %v1355, %v1354
    %v1363 = vpack.c.b16 %v1357, %v1356
    %v1364 = vpack.c.b16 %v1359, %v1358
    %v1365 = vpack.c.b16 %v1361, %v1360
    %vm1370 = vcmask 523264
    %v1372 = vsel %vm1370, %v1339, 0
    %v1375 = vsel %vm1370, %v1340, 0
    %1377 = vmatprep.subr.bf16.mxu0 0
    %1378 = vmatpush1.bf16.msra.mxu0 %v1362
    %1379 = vmatprep.subr.bf16.mxu0 0
    %1380 = vmatpush1.bf16.msra.mxu0 %v1363
    %1381 = vmatprep.subr.bf16.mxu0 0
    %1382 = vmatpush1.bf16.msra.mxu0 %v1364
    %1383 = vmatprep.subr.bf16.mxu0 0
    %1384 = vmatpush1.bf16.msra.mxu0 %v1365
    %1385 = vmatprep.subr.bf16.mxu0 0
    %1386 = vmatpush1.bf16.msra.mxu0 0
    %1387 = vmatprep.subr.bf16.mxu0 0
    %1388 = vmatpush1.bf16.msra.mxu0 0
    %1389 = vmatprep.subr.bf16.mxu0 0
    %1390 = vmatpush1.bf16.msra.mxu0 0
    %1391 = vmatprep.subr.bf16.mxu0 0
    %1392 = vmatpush1.bf16.msra.mxu0 0
    %1393 = vmatprep.subr.bf16.mxu0 0
    %1394 = vmatpush1.bf16.msra.mxu0 0
    %1395 = vmatprep.subr.bf16.mxu0 0
    %1396 = vmatpush1.bf16.msra.mxu0 0
    %1397 = vmatprep.subr.bf16.mxu0 0
    %1398 = vmatpush1.bf16.msra.mxu0 0
    %1399 = vmatprep.subr.bf16.mxu0 0
    %1400 = vmatpush1.bf16.msra.mxu0 0
    %1401 = vmatprep.subr.bf16.mxu0 0
    %1402 = vmatpush1.bf16.msra.mxu0 0
    %1403 = vmatprep.subr.bf16.mxu0 0
    %1404 = vmatpush1.bf16.msra.mxu0 0
    %1405 = vmatprep.subr.bf16.mxu0 0
    %1406 = vmatpush1.bf16.msra.mxu0 0
    %1407 = vmatprep.subr.bf16.mxu0 0
    %1408 = vmatpush1.bf16.msra.mxu0 0
    %1409 = vmatprep.mubr.bf16.mxu0 0
    %1410 = vmatmul.mubr.bf16.gmra.mrb[0].mxu0 %v1372
    %v1411 = vpop.f32.mrb[0].mxu0
    %v1412 = vadd.f32 %v1345, %v1411
    %v1413 = vpop.f32.mrb[0].mxu0
    %v1414 = vpop.f32.mrb[0].mxu0
    %v1415 = vadd.f32 %v1345, %v1414
    %v1416 = vpop.f32.mrb[0].mxu0
    %1417 = vmatprep.mubr.bf16.mxu0 0
    %1418 = vmatmul.mubr.bf16.gmra.mrb[0].mxu0 %v1375
    %v1419 = vpop.f32.mrb[0].mxu0
    %v1420 = vadd.f32 %v1345, %v1419
    %v1421 = vpop.f32.mrb[0].mxu0
    %v1422 = vpop.f32.mrb[0].mxu0
    %v1423 = vadd.f32 %v1345, %v1422
    %v1424 = vpop.f32.mrb[0].mxu0
    %1425 = vdwg.mxu0
    %v1426 = vadd.f32 %v1245, %v1412
    %v1427 = vadd.f32 %v1246, %v1415
    %v1428 = vadd.f32 %v1247, %v1420
    %v1429 = vadd.f32 %v1248, %v1423
    %v1430 = vld [vmem:[%s3 + $0x7] sm:$0x1]
    %v1431 = vld [vmem:[%s3 + $0x8] sm:$0x1]
    %v1432 = vsel %vm137, %v1426, 0.0
    %1433 = vadd.xlane.f32.xlu0 %v1432
    %v1434 = vpop.xlane.xlu0 %1433
    %v1435 = vsel %vm137, %v1427, 0.0
    %1436 = vadd.xlane.f32.xlu0 %v1435
    %v1437 = vpop.xlane.xlu0 %1436
    %v1438 = vsel %vm137, %v1428, 0.0
    %1439 = vadd.xlane.f32.xlu0 %v1438
    %v1440 = vpop.xlane.xlu0 %1439
    %v1441 = vsel %vm137, %v1429, 0.0
    %1442 = vadd.xlane.f32.xlu0 %v1441
    %v1443 = vpop.xlane.xlu0 %1442
    %v1444 = vmul.f32 %v1434, %v1192
    %v1445 = vmul.f32 %v1437, %v1192
    %v1446 = vmul.f32 %v1440, %v1192
    %v1447 = vmul.f32 %v1443, %v1192
    %v1448 = vsub.f32 %v1426, %v1444
    %v1449 = vsub.f32 %v1427, %v1445
    %v1450 = vsub.f32 %v1428, %v1446
    %v1451 = vsub.f32 %v1429, %v1447
    %v1452 = vmul.f32 %v1448, %v1448
    %v1453 = vmul.f32 %v1449, %v1449
    %v1454 = vmul.f32 %v1450, %v1450
    %v1455 = vmul.f32 %v1451, %v1451
    %v1456 = vsel %vm137, %v1452, 0.0
    %1457 = vadd.xlane.f32.xlu0 %v1456
    %v1458 = vpop.xlane.xlu0 %1457
    %v1459 = vsel %vm137, %v1453, 0.0
    %1460 = vadd.xlane.f32.xlu0 %v1459
    %v1461 = vpop.xlane.xlu0 %1460
    %v1462 = vsel %vm137, %v1454, 0.0
    %1463 = vadd.xlane.f32.xlu0 %v1462
    %v1464 = vpop.xlane.xlu0 %1463
    %v1465 = vsel %vm137, %v1455, 0.0
    %1466 = vadd.xlane.f32.xlu0 %v1465
    %v1467 = vpop.xlane.xlu0 %1466
    %v1468 = vmul.f32 %v1458, %v1192
    %v1469 = vmul.f32 %v1461, %v1192
    %v1470 = vmul.f32 %v1464, %v1192
    %v1471 = vmul.f32 %v1467, %v1192
    %v1472 = vadd.f32 %v1468, 1e-05
    %v1473 = vadd.f32 %v1469, 1e-05
    %v1474 = vadd.f32 %v1470, 1e-05
    %v1475 = vadd.f32 %v1471, 1e-05
    %v1476 = vrsqrt.pop %v1472
    %v1477 = vrsqrt.pop %v1473
    %v1478 = vrsqrt.pop %v1474
    %v1479 = vrsqrt.pop %v1475
    %v1480 = vmul.f32 %v1448, %v1476
    %v1481 = vmul.f32 %v1449, %v1477
    %v1482 = vmul.f32 %v1450, %v1478
    %v1483 = vmul.f32 %v1451, %v1479
    %v1484 = vlaneseq
    %v1485 = vshrl.u32 %v1484, 7
    %v1486 = vsub.s32 0, %v1485
    %v1487 = vrot.slane %v1430, %v1486
    %v1488 = vmul.f32 %v1480, %v1487
    %v1489 = vmul.f32 %v1481, %v1487
    %v1490 = vmul.f32 %v1482, %v1487
    %v1491 = vmul.f32 %v1483, %v1487
    %v1492 = vlaneseq
    %v1493 = vshrl.u32 %v1492, 7
    %v1494 = vsub.s32 0, %v1493
    %v1495 = vrot.slane %v1431, %v1494
    %v1496 = vadd.f32 %v1488, %v1495
    %v1497 = vadd.f32 %v1489, %v1495
    %v1498 = vadd.f32 %v1490, %v1495
    %v1499 = vadd.f32 %v1491, %v1495
    %v1500 = vsel %vm137, %v1496, 0.0
    %v1501 = vrot.slane %v1500, 4
    %v1502 = vadd.f32 %v1500, %v1501
    %v1503 = vrot.slane %v1502, 2
    %v1504 = vadd.f32 %v1502, %v1503
    %v1505 = vrot.slane %v1504, 1
    %v1506 = vadd.f32 %v1504, %v1505
    %v1507 = vsel %vm137, %v1497, 0.0
    %v1508 = vrot.slane %v1507, 4
    %v1509 = vadd.f32 %v1507, %v1508
    %v1510 = vrot.slane %v1509, 2
    %v1511 = vadd.f32 %v1509, %v1510
    %v1512 = vrot.slane %v1511, 1
    %v1513 = vadd.f32 %v1511, %v1512
    %v1514 = vsel %vm137, %v1498, 0.0
    %v1515 = vrot.slane %v1514, 4
    %v1516 = vadd.f32 %v1514, %v1515
    %v1517 = vrot.slane %v1516, 2
    %v1518 = vadd.f32 %v1516, %v1517
    %v1519 = vrot.slane %v1518, 1
    %v1520 = vadd.f32 %v1518, %v1519
    %v1521 = vsel %vm137, %v1499, 0.0
    %v1522 = vrot.slane %v1521, 4
    %v1523 = vadd.f32 %v1521, %v1522
    %v1524 = vrot.slane %v1523, 2
    %v1525 = vadd.f32 %v1523, %v1524
    %v1526 = vrot.slane %v1525, 1
    %v1527 = vadd.f32 %v1525, %v1526
    %v1528 = vrcp.pop 8.0
    %v1529 = vmul.f32 %v1506, %v1528
    %v1530 = vmul.f32 %v1513, %v1528
    %v1531 = vmul.f32 %v1520, %v1528
    %v1532 = vmul.f32 %v1527, %v1528
    %v1533 = vld [vmem:[#allocation2 + $0x60] sm:$0xf]
    %v1534 = vld [vmem:[#allocation2 + $0x64] sm:$0xf]
    %v1535 = vld [vmem:[#allocation2 + $0x68] sm:$0xf]
    %v1536 = vld [vmem:[#allocation2 + $0x6c] sm:$0xf]
    %v1537 = vpack.c.bf16 %v1529, %v1529
    %v1538 = vpack.c.bf16 %v1530, %v1530
    %v1539 = vpack.c.bf16 %v1531, %v1531
    %v1540 = vpack.c.bf16 %v1532, %v1532
    %v1541 = vld [vmem:[%s3 + $0x9] sm:$0x1]
    %v1542 = vlaneseq
    %v1543 = vshrl.u32 %v1542, 7
    %v1544 = vsub.s32 0, %v1543
    %v1545 = vrot.slane %v1541, %v1544
    %v1550 = vunpack.c.l.b16 %v1537
    %v1551 = vunpack.c.l.b16 %v1538
    %v1552 = vunpack.c.l.b16 %v1539
    %v1553 = vunpack.c.l.b16 %v1540
    %vm1554 = vcmask 1041409
    %v1555 = vsel %vm1554, %v1551, %v1550
    %vm1556 = vcmask 1042434
    %v1557 = vsel %vm1556, %v1552, %v1555
    %vm1558 = vcmask 1043459
    %v1559 = vsel %vm1558, %v1553, %v1557
    %v1560 = vpack.c.b16 %v1559, %v1559
    %v1565 = vunpack.c.l.b16 %v1533
    %v1566 = vunpack.c.l.b16 %v1534
    %v1567 = vunpack.c.l.b16 %v1535
    %v1568 = vunpack.c.l.b16 %v1536
    %v1569 = vpack.c.b16 %v1566, %v1565
    %v1570 = vpack.c.b16 %v1568, %v1567
    %v1574 = vsel %vm137, %v1560, 0
    %1576 = vmatprep.subr.bf16.mxu0 0
    %1577 = vmatpush1.bf16.msra.mxu0 %v1569
    %1578 = vmatprep.subr.bf16.mxu0 0
    %1579 = vmatpush1.bf16.msra.mxu0 %v1570
    %1580 = vmatprep.subr.bf16.mxu0 0
    %1581 = vmatpush1.bf16.msra.mxu0 0
    %1582 = vmatprep.subr.bf16.mxu0 0
    %1583 = vmatpush1.bf16.msra.mxu0 0
    %1584 = vmatprep.subr.bf16.mxu0 0
    %1585 = vmatpush1.bf16.msra.mxu0 0
    %1586 = vmatprep.subr.bf16.mxu0 0
    %1587 = vmatpush1.bf16.msra.mxu0 0
    %1588 = vmatprep.subr.bf16.mxu0 0
    %1589 = vmatpush1.bf16.msra.mxu0 0
    %1590 = vmatprep.subr.bf16.mxu0 0
    %1591 = vmatpush1.bf16.msra.mxu0 0
    %1592 = vmatprep.subr.bf16.mxu0 0
    %1593 = vmatpush1.bf16.msra.mxu0 0
    %1594 = vmatprep.subr.bf16.mxu0 0
    %1595 = vmatpush1.bf16.msra.mxu0 0
    %1596 = vmatprep.subr.bf16.mxu0 0
    %1597 = vmatpush1.bf16.msra.mxu0 0
    %1598 = vmatprep.subr.bf16.mxu0 0
    %1599 = vmatpush1.bf16.msra.mxu0 0
    %1600 = vmatprep.subr.bf16.mxu0 0
    %1601 = vmatpush1.bf16.msra.mxu0 0
    %1602 = vmatprep.subr.bf16.mxu0 0
    %1603 = vmatpush1.bf16.msra.mxu0 0
    %1604 = vmatprep.subr.bf16.mxu0 0
    %1605 = vmatpush1.bf16.msra.mxu0 0
    %1606 = vmatprep.subr.bf16.mxu0 0
    %1607 = vmatpush1.bf16.msra.mxu0 0
    %1608 = vmatprep.mubr.bf16.mxu0 0
    %1609 = vmatmul.mubr.bf16.gmra.mrb[0].mxu0 %v1574
    %v1610 = vpop.f32.mrb[0].mxu0
    %v1611 = vadd.f32 %v1545, %v1610
    %v1612 = vpop.f32.mrb[0].mxu0
    %v1613 = vpop.f32.mrb[0].mxu0
    %v1614 = vpop.f32.mrb[0].mxu0
    %1615 = vdwg.mxu0
    %v1616 = vmax.f32 %v1611, 0.0
    %v1617 = vld [vmem:[#allocation2 + $0x70] sm:$0xf]
    %v1618 = vld [vmem:[#allocation2 + $0x74] sm:$0xf]
    %v1619 = vld [vmem:[#allocation2 + $0x78] sm:$0xf]
    %v1620 = vld [vmem:[#allocation2 + $0x7c] sm:$0xf]
    %v1621 = vld [vmem:[#allocation2 + $0x80] sm:$0xf]
    %v1622 = vld [vmem:[#allocation2 + $0x84] sm:$0xf]
    %v1623 = vld [vmem:[#allocation2 + $0x88] sm:$0xf]
    %v1624 = vld [vmem:[#allocation2 + $0x8c] sm:$0xf]
    %v1625 = vpack.c.bf16 %v1616, %v1616
    %v1626 = vld [vmem:[%s3 + $0xa] sm:$0x1]
    %v1627 = vlaneseq
    %v1628 = vshrl.u32 %v1627, 7
    %v1629 = vsub.s32 0, %v1628
    %v1630 = vrot.slane %v1626, %v1629
    %v1639 = vunpack.c.l.b16 %v1617
    %v1640 = vunpack.c.l.b16 %v1618
    %v1641 = vunpack.c.l.b16 %v1619
    %v1642 = vunpack.c.l.b16 %v1620
    %v1643 = vunpack.c.l.b16 %v1621
    %v1644 = vunpack.c.l.b16 %v1622
    %v1645 = vunpack.c.l.b16 %v1623
    %v1646 = vunpack.c.l.b16 %v1624
    %v1647 = vpack.c.b16 %v1640, %v1639
    %v1648 = vpack.c.b16 %v1642, %v1641
    %v1649 = vpack.c.b16 %v1644, %v1643
    %v1650 = vpack.c.b16 %v1646, %v1645
    %v1656 = vsel %vm1370, %v1625, 0
    %1658 = vmatprep.subr.bf16.mxu0 0
    %1659 = vmatpush1.bf16.msra.mxu0 %v1647
    %1660 = vmatprep.subr.bf16.mxu0 0
    %1661 = vmatpush1.bf16.msra.mxu0 %v1648
    %1662 = vmatprep.subr.bf16.mxu0 0
    %1663 = vmatpush1.bf16.msra.mxu0 %v1649
    %1664 = vmatprep.subr.bf16.mxu0 0
    %1665 = vmatpush1.bf16.msra.mxu0 %v1650
    %1666 = vmatprep.subr.bf16.mxu0 0
    %1667 = vmatpush1.bf16.msra.mxu0 0
    %1668 = vmatprep.subr.bf16.mxu0 0
    %1669 = vmatpush1.bf16.msra.mxu0 0
    %1670 = vmatprep.subr.bf16.mxu0 0
    %1671 = vmatpush1.bf16.msra.mxu0 0
    %1672 = vmatprep.subr.bf16.mxu0 0
    %1673 = vmatpush1.bf16.msra.mxu0 0
    %1674 = vmatprep.subr.bf16.mxu0 0
    %1675 = vmatpush1.bf16.msra.mxu0 0
    %1676 = vmatprep.subr.bf16.mxu0 0
    %1677 = vmatpush1.bf16.msra.mxu0 0
    %1678 = vmatprep.subr.bf16.mxu0 0
    %1679 = vmatpush1.bf16.msra.mxu0 0
    %1680 = vmatprep.subr.bf16.mxu0 0
    %1681 = vmatpush1.bf16.msra.mxu0 0
    %1682 = vmatprep.subr.bf16.mxu0 0
    %1683 = vmatpush1.bf16.msra.mxu0 0
    %1684 = vmatprep.subr.bf16.mxu0 0
    %1685 = vmatpush1.bf16.msra.mxu0 0
    %1686 = vmatprep.subr.bf16.mxu0 0
    %1687 = vmatpush1.bf16.msra.mxu0 0
    %1688 = vmatprep.subr.bf16.mxu0 0
    %1689 = vmatpush1.bf16.msra.mxu0 0
    %1690 = vmatprep.mubr.bf16.mxu0 0
    %1691 = vmatmul.mubr.bf16.gmra.mrb[0].mxu0 %v1656
    %v1692 = vpop.f32.mrb[0].mxu0
    %v1693 = vadd.f32 %v1630, %v1692
    %v1694 = vpop.f32.mrb[0].mxu0
    %v1695 = vpop.f32.mrb[0].mxu0
    %v1696 = vpop.f32.mrb[0].mxu0
    %1697 = vdwg.mxu0
    %vm1698 = vcmask 123904
    %1699 = vst.msk [vmem:[#allocation5] sm:$0x3] %vm1698, %v1693
    %vm1700 = vcmask 125954
    %1701 = vst.msk [vmem:[#allocation6 - $0x2] sm:$0xc] %vm1700, %v1693
    // Predicated region
    $region22: #{tpu_custom_call.1} parent=1 // pred_check
      _
    $region23: #{tpu_custom_call.1} parent=1 // pred_check_branch
      %1703 = sbr.rel (0) target = $region25
    $region24: #{tpu_custom_call.1} parent=1 // pred_region
      %s1705 = ssub.s32 32, 32
      %1706 = vsyncadd [#allocation4], %s1705
      %s1708 = sshll.u32 [#allocation5], 4
      %s1709 = int_to_ptr.vmem [resolvable:$true] %s1708
      %1711 = dma.vmem_to_hbm [thread:$0]  %s1709, 32, %s4, [#allocation4]
    $region25: #{tpu_custom_call.1} parent=1 // pred_fallthru
      _
    // Predicated region
    $region26: #{tpu_custom_call.1} parent=1 // pred_check
      _
    $region27: #{tpu_custom_call.1} parent=1 // pred_check_branch
      %1713 = sbr.rel (0) target = $region29
    $region28: #{tpu_custom_call.1} parent=1 // pred_region
      %s1715 = ssub.s32 32, 32
      %1716 = vsyncadd [#allocation7], %s1715
      %s1718 = sshll.u32 [#allocation6], 4
      %s1719 = int_to_ptr.vmem [resolvable:$true] %s1718
      %1721 = dma.vmem_to_hbm [thread:$0]  %s1719, 32, %s5, [#allocation7]
    $region29: #{tpu_custom_call.1} parent=1 // pred_fallthru
      _
    // Predicated region
    $region30: #{tpu_custom_call.1} parent=1 // pred_check
      _
    $region31: #{tpu_custom_call.1} parent=1 // pred_check_branch
      %1723 = sbr.rel (0) target = $region33
    $region32: #{tpu_custom_call.1} parent=1 // pred_region
      %1724 = dma.done [#allocation4], 32
    $region33: #{tpu_custom_call.1} parent=1 // pred_fallthru
      _
    // Predicated region
    $region34: #{tpu_custom_call.1} parent=1 // pred_check
      _
    $region35: #{tpu_custom_call.1} parent=1 // pred_check_branch
      %1726 = sbr.rel (0) target = $region37
    $region36: #{tpu_custom_call.1} parent=1 // pred_region
      %1727 = dma.done [#allocation7], 32
    $region37: #{tpu_custom_call.1} parent=1 // pred_fallthru
      _
    %1728 = vsyncpa [#allocation3], 1
    %1729 = vsyncpa [#allocation4], 1
    %1730 = vsyncpa [#allocation7], 1

</llo_original>
